<compile_context>
chip_gen: v7x
topology: tpu7x:2x2x1
jax: 0.10.0
libtpu: 0.0.40
codegen_flags: <defaults>
</compile_context>

<pallas_src>
import functools

import jax
import jax.numpy as jnp
from jax import lax
from jax.experimental import pallas as pl
from jax.experimental.pallas import tpu as pltpu

NUM_ANCHORS = 9
N_CLS = NUM_ANCHORS * 2            # 18
N_REG = NUM_ANCHORS * 4            # 36
N_HEAD = N_CLS + N_REG             # 54
HEAD_PAD = ((N_HEAD + 127) // 128) * 128   # lane-dense fused head width (128)
LANE = 128

# Flipped to False (once per process) if pl.Buffered(1) on grid-invariant
# pallas_call inputs is rejected by this jax/libtpu combination.
_SINGLE_BUFFER_WEIGHTS_OK = True


# ---------------------------------------------------------------------------
# Kernel: one (batch, row-tile) step of conv3x3 + bias + ReLU + fused heads.
# ---------------------------------------------------------------------------
def _rpn_tile_kernel(xt_ref, w3_ref, b3_ref, wh_ref, bh_ref, out_ref,
                     *, tile_rows, W):
    m_out = tile_rows * W              # output rows of this tile
    m_ext = xt_ref.shape[0]            # (tile_rows + 2) * W + 2 flattened rows

    # Flattened halo tile.  Work in f32 for the mask/slice plumbing (robust
    # 32-bit sublane layouts at arbitrary row offsets); cast to bf16 exactly
    # once (the im2col operand) before the MXU.
    xs = xt_ref[...].astype(jnp.float32)

    # Emulate the 1-pixel zero padding along W with two whole-tile masks.  Every
    # (dy, dx) tap is then a static slice:  tap[p] == xs[p + dy*W + dx].
    rowmod = lax.broadcasted_iota(jnp.int32, (m_ext, 1), 0) % W
    zero = jnp.zeros((), dtype=xs.dtype)
    x_left = jnp.where(rowmod == 0, zero, xs)        # dx == 0 taps: w-1 < 0  -> 0
    x_right = jnp.where(rowmod == 1 % W, zero, xs)   # dx == 2 taps: w+1 >= W -> 0
    variants = (x_left, xs, x_right)

    # im2col: one lane-dense (m_out, 9*Cin) operand -> a single K=9*Cin MXU dot
    # (internal accumulation) instead of 9 read-modify-write accumulator passes.
    # K order is (dy, dx, cin), matching w3_ref's row order.
    taps = [variants[dx][dy * W + dx: dy * W + dx + m_out]
            for dy in range(3) for dx in range(3)]
    patches = jnp.concatenate(taps, axis=-1).astype(w3_ref.dtype)

    conv = jnp.dot(patches, w3_ref[...], preferred_element_type=jnp.float32)
    act = jnp.maximum(conv + b3_ref[...], 0.0).astype(wh_ref.dtype)
    out_ref[...] = (jnp.dot(act, wh_ref[...], preferred_element_type=jnp.float32)
                    + bh_ref[...])


# ---------------------------------------------------------------------------
# pallas_call builder
# ---------------------------------------------------------------------------
def _build_rpn_call(kernel, B, nT, m_ext, m_out, Cin_p, Cout, vmem_limit,
                    single_buffer_weights):
    const_kwargs = (
        dict(pipeline_mode=pl.Buffered(1)) if single_buffer_weights else {})
    grid_spec = pltpu.PrefetchScalarGridSpec(
        num_scalar_prefetch=0,
        grid=(B, nT),
        in_specs=[
            pl.BlockSpec((None, None, m_ext, Cin_p), lambda b, t: (b, t, 0, 0)),
            # Grid-invariant weights/biases: fetched once; single-buffered when
            # supported (saves the redundant ~4.9 MiB double-buffer at 512 ch).
            pl.BlockSpec((9 * Cin_p, Cout), lambda b, t: (0, 0), **const_kwargs),
            pl.BlockSpec((1, Cout), lambda b, t: (0, 0), **const_kwargs),
            pl.BlockSpec((Cout, HEAD_PAD), lambda b, t: (0, 0), **const_kwargs),
            pl.BlockSpec((1, HEAD_PAD), lambda b, t: (0, 0), **const_kwargs),
        ],
        out_specs=pl.BlockSpec((None, None, m_out, HEAD_PAD),
                               lambda b, t: (b, t, 0, 0)),
    )
    return pl.pallas_call(
        kernel,
        out_shape=jax.ShapeDtypeStruct((B, nT, m_out, HEAD_PAD), jnp.float32),
        grid_spec=grid_spec,
        compiler_params=pltpu.CompilerParams(
            # Both axes are independent, so v7x can shard the grid across its two
            # TensorCores; near-neutral on single-TC v5e/v6e.
            dimension_semantics=("parallel", "parallel"),
            vmem_limit_bytes=vmem_limit),
    )


def _vmem_capacity_bytes():
    try:
        cap = int(getattr(pltpu.get_tpu_info(), "vmem_capacity_bytes", 0) or 0)
        if cap > 0:
            return cap
    except Exception:
        pass
    return 64 << 20   # conservative default: v7x per-TensorCore VMEM


def _vmem_limit_bytes(m_ext, m_out, Cin_p, Cout):
    bf16, f32 = 2, 4
    in_tile = m_ext * Cin_p * bf16
    weights = (9 * Cin_p * Cout * bf16 + Cout * HEAD_PAD * bf16
               + (Cout + HEAD_PAD) * f32)
    out_tile = m_out * HEAD_PAD * f32
    temps = (3 * m_ext * Cin_p * f32                 # xs + 2 masked variants (f32)
             + m_out * 9 * Cin_p * (f32 + bf16)      # im2col patches (f32 + bf16)
             + m_out * Cout * (f32 + bf16)           # conv result + bf16 act
             + m_out * HEAD_PAD * f32)               # head result before store
    est = 2 * in_tile + 2 * weights + 2 * out_tile + temps
    cap = _vmem_capacity_bytes()
    # 1.5x estimate for Mosaic-internal scratch, floored at 16 MiB, capped at
    # 3/4 of physical VMEM (<= 48 MiB on v7x's 64 MiB parts).
    return int(min(max(est * 3 // 2, 16 << 20), cap * 3 // 4))


def _pick_tile_rows(H, W, target_rows=512):
    """Divisor tH of H whose flattened tile (tH*W rows) is closest to the target,
    preferring sublane-aligned (multiple-of-8) tile sizes.  Raise target_rows to
    ~1024-2048 on v6e/v5e (128 MiB VMEM) to amortize per-step overhead."""
    best, best_key = 1, None
    for d in range(1, H + 1):
        if H % d:
            continue
        m = d * W
        key = ((m % 8) == 0, -abs(m - target_rows))
        if best_key is None or key > best_key:
            best, best_key = d, key
    return best


# ---------------------------------------------------------------------------
# Wrapper
# ---------------------------------------------------------------------------
def rpn_forward(features_nhwc, params, *, tile_rows=None, target_rows=512):
    """features_nhwc: (B, H, W, Cin) float32.  Returns (pred_cls, pred_reg) in
    the PyTorch module's layout: (B, H*W*9, 2) and (B, H*W*9, 4).

    MXU operands are bf16 (f32 accumulation): results match a bf16-quantised
    reference to ~1e-2 rather than a pure-f32 PyTorch run bit-for-bit."""
    B, H, W, Cin = features_nhwc.shape
    w3, b3, wc, bc, wr, br = params
    Cout = w3.shape[-1]

    tH = _pick_tile_rows(H, W, target_rows) if tile_rows is None else tile_rows
    assert H % tH == 0, "tile_rows must divide H"
    nT = H // tH
    m_out = tH * W
    m_ext = (tH + 2) * W + 2          # 1-row H halo on each side + 2 guard rows

    # Lane-align the conv input channels so the im2col concat / MXU K stay
    # 128-aligned even for shallow backbones (no-op at the 512-ch production config).
    Cin_p = max(LANE, ((Cin + LANE - 1) // LANE) * LANE)

    # ---- operand prep: bf16 MXU operands, fused lane-dense head -------------
    x_bf = features_nhwc.astype(jnp.bfloat16)
    x_bf = jnp.pad(x_bf, ((0, 0), (1, 1), (0, 0), (0, Cin_p - Cin)))
    x_flat = x_bf.reshape(B, (H + 2) * W, Cin_p)
    x_flat = jnp.pad(x_flat, ((0, 0), (1, 1), (0, 0)))       # guard rows (masked)
    # Overlapping halo windows, pre-flattened so the kernel never reshapes across
    # (8, 128) tile boundaries.
    # TODO(synk): replace this stack (one extra HBM pass over the features) with a
    # memory_space=pl.ANY feature input + manual make_async_copy double-buffering
    # of the (tH+2)-row window inside the kernel.
    x_tiles = jnp.stack(
        [lax.slice_in_dim(x_flat, t * tH * W, t * tH * W + m_ext, axis=1)
         for t in range(nT)], axis=1)                         # (B, nT, m_ext, Cin_p)

    # im2col-ordered 3x3 weights: rows ordered (dy, dx, cin).
    w3_k = jnp.pad(w3, ((0, 0), (0, 0), (0, Cin_p - Cin), (0, 0)))
    w3_k = w3_k.reshape(9 * Cin_p, Cout).astype(jnp.bfloat16)
    b3_k = b3.reshape(1, Cout).astype(jnp.float32)

    # Fused, lane-dense cls|reg head (padded to 128 lanes).
    wh = jnp.concatenate([wc, wr], axis=1)
    wh = jnp.pad(wh, ((0, 0), (0, HEAD_PAD - N_HEAD))).astype(jnp.bfloat16)
    bh = jnp.concatenate([bc.reshape(1, -1), br.reshape(1, -1)], axis=1)
    bh = jnp.pad(bh, ((0, 0), (0, HEAD_PAD - N_HEAD))).astype(jnp.float32)

    kernel = functools.partial(_rpn_tile_kernel, tile_rows=tH, W=W)
    vmem_limit = _vmem_limit_bytes(m_ext, m_out, Cin_p, Cout)
    args = (x_tiles, w3_k, b3_k, wh, bh)

    global _SINGLE_BUFFER_WEIGHTS_OK
    out = None
    if _SINGLE_BUFFER_WEIGHTS_OK:
        try:
            out = _build_rpn_call(kernel, B, nT, m_ext, m_out, Cin_p, Cout,
                                  vmem_limit, single_buffer_weights=True)(*args)
        except Exception:
            # pl.Buffered(1) on constant pallas_call inputs is not supported on
            # every jax/libtpu combo; fall back to default double buffering
            # (only costs VMEM headroom, never correctness).  Note: under an
            # outer jit the fallback cannot trigger; call eagerly once first.
            _SINGLE_BUFFER_WEIGHTS_OK = False
    if out is None:
        out = _build_rpn_call(kernel, B, nT, m_ext, m_out, Cin_p, Cout,
                              vmem_limit, single_buffer_weights=False)(*args)

    # (B, nT, tH*W, 128) -> (B, H*W, 128) -> split the fused head and reshape to
    # the anchor-major layout of the PyTorch permute(0,2,3,1).view(...) reference.
    out = out.reshape(B, H * W, HEAD_PAD)
    pred_cls = out[..., :N_CLS].reshape(B, H * W * NUM_ANCHORS, 2)
    pred_reg = out[..., N_CLS:N_HEAD].reshape(B, H * W * NUM_ANCHORS, 4)
    return pred_cls, pred_reg


def init_params(key, in_channels, out_channels):
    """normal_init(mean=0, std=0.01) for weights, zero biases — deterministic."""
    k1, k2, k3 = jax.random.split(key, 3)
    w3 = 0.01 * jax.random.normal(k1, (3, 3, in_channels, out_channels),
                                  dtype=jnp.float32)
    b3 = jnp.zeros((1, out_channels), dtype=jnp.float32)
    wc = 0.01 * jax.random.normal(k2, (out_channels, N_CLS), dtype=jnp.float32)
    bc = jnp.zeros((1, N_CLS), dtype=jnp.float32)
    wr = 0.01 * jax.random.normal(k3, (out_channels, N_REG), dtype=jnp.float32)
    br = jnp.zeros((1, N_REG), dtype=jnp.float32)
    return (w3, b3, wc, bc, wr, br)


def _reference_forward(features_nhwc, params):
    """Pure-JAX reference (lax.conv) for a correctness sanity check."""
    w3, b3, wc, bc, wr, br = params
    x = lax.conv_general_dilated(
        features_nhwc, w3, window_strides=(1, 1), padding="SAME",
        dimension_numbers=("NHWC", "HWIO", "NHWC"))
    x = jax.nn.relu(x + b3[0])
    cls = jnp.einsum("bhwc,cd->bhwd", x, wc) + bc[0]
    reg = jnp.einsum("bhwc,cd->bhwd", x, wr) + br[0]
    B = features_nhwc.shape[0]
    return cls.reshape(B, -1, 2), reg.reshape(B, -1, 4)


if __name__ == "__main__":
    key = jax.random.PRNGKey(0)
    k_feat, k_par = jax.random.split(key)

    B, H, W = 2, 8, 8
    Cin = Cout = 32   # small stand-in for the 512-channel production config

    features = jax.random.normal(k_feat, (B, H, W, Cin), dtype=jnp.float32)
    params = init_params(k_par, Cin, Cout)

    # tile_rows=4 exercises the row-tiled halo path: grid = (B, nT) = (2, 2).
    pred_cls, pred_reg = rpn_forward(features, params, tile_rows=4)
    jax.block_until_ready((pred_cls, pred_reg))

    assert pred_cls.shape == (B, H * W * NUM_ANCHORS, 2), pred_cls.shape
    assert pred_reg.shape == (B, H * W * NUM_ANCHORS, 4), pred_reg.shape

    # Compare against a pure-JAX f32 reference evaluated on the same
    # bf16-quantised operands the kernel consumes (bf16 x bf16 -> f32 MXU).
    q = lambda a: a.astype(jnp.bfloat16).astype(jnp.float32)
    ref_cls, ref_reg = _reference_forward(q(features), tuple(q(p) for p in params))

    assert jnp.allclose(pred_cls, ref_cls, atol=1e-2, rtol=1e-2), (
        float(jnp.max(jnp.abs(pred_cls - ref_cls))))
    assert jnp.allclose(pred_reg, ref_reg, atol=1e-2, rtol=1e-2), (
        float(jnp.max(jnp.abs(pred_reg - ref_reg))))

    print("KERNEL_OK")
</pallas_src>

<mosaic_0001>
module attributes {stable_mosaic.version = 11 : i64} {
  func.func @_rpn_tile_kernel(%arg0: i32, %arg1: i32, %arg2: memref<1x1x50x128xbf16, #tpu.memory_space<vmem>>, %arg3: memref<1152x32xbf16, #tpu.memory_space<vmem>>, %arg4: memref<1x32xf32, #tpu.memory_space<vmem>>, %arg5: memref<32x128xbf16, #tpu.memory_space<vmem>>, %arg6: memref<1x128xf32, #tpu.memory_space<vmem>>, %arg7: memref<1x1x32x128xf32, #tpu.memory_space<vmem>>) attributes {dimension_semantics = [#tpu.dimension_semantics<parallel>, #tpu.dimension_semantics<parallel>], iteration_bounds = array<i64: 2, 2>, scalar_prefetch = 0 : i64, scratch_operands = 0 : i64, tpu.core_type = #tpu.core_type<tc>, window_params = [{transform_indices = @transform_0, window_bounds = array<i64: 1, 1, 50, 128>}, {pipeline_mode = #tpu.pipeline_mode<synchronous>, transform_indices = @transform_1, window_bounds = array<i64: 1152, 32>}, {pipeline_mode = #tpu.pipeline_mode<synchronous>, transform_indices = @transform_2, window_bounds = array<i64: 1, 32>}, {pipeline_mode = #tpu.pipeline_mode<synchronous>, transform_indices = @transform_3, window_bounds = array<i64: 32, 128>}, {pipeline_mode = #tpu.pipeline_mode<synchronous>, transform_indices = @transform_4, window_bounds = array<i64: 1, 128>}, {transform_indices = @transform_5, window_bounds = array<i64: 1, 1, 32, 128>}]} {
    %c0 = arith.constant 0 : index
    %c0_0 = arith.constant 0 : index
    %c0_1 = arith.constant 0 : index
    %c0_2 = arith.constant 0 : index
    %0 = vector.load %arg2[%c0, %c0_0, %c0_1, %c0_2] : memref<1x1x50x128xbf16, #tpu.memory_space<vmem>>, vector<1x1x50x128xbf16>
    %1 = vector.shape_cast %0 : vector<1x1x50x128xbf16> to vector<50x128xbf16>
    %2 = arith.extf %1 : vector<50x128xbf16> to vector<50x128xf32>
    %3 = tpu.iota {dimensions = array<i32: 0>} : vector<50x1xi32>
    %c8_i32 = arith.constant 8 : i32
    %c0_i32 = arith.constant 0 : i32
    %4 = arith.cmpi eq, %c8_i32, %c0_i32 : i32
    %c1_i32 = arith.constant 1 : i32
    %5 = arith.select %4, %c1_i32, %c8_i32 : i32
    %6 = vector.broadcast %5 : i32 to vector<50x1xi32>
    %7 = arith.remsi %3, %6 : vector<50x1xi32>
    %c0_i32_3 = arith.constant 0 : i32
    %8 = vector.broadcast %c0_i32_3 : i32 to vector<50x1xi32>
    %9 = arith.cmpi ne, %7, %8 : vector<50x1xi32>
    %c0_i32_4 = arith.constant 0 : i32
    %10 = vector.broadcast %c0_i32_4 : i32 to vector<50x1xi32>
    %11 = arith.cmpi slt, %7, %10 : vector<50x1xi32>
    %c0_i32_5 = arith.constant 0 : i32
    %12 = arith.cmpi slt, %5, %c0_i32_5 : i32
    %13 = vector.broadcast %12 : i1 to vector<50x1xi1>
    %14 = vector.broadcast %13 : vector<50x1xi1> to vector<50x1xi1>
    %15 = arith.xori %11, %14 : vector<50x1xi1>
    %16 = arith.andi %15, %9 : vector<50x1xi1>
    %17 = vector.broadcast %5 : i32 to vector<50x1xi32>
    %18 = arith.addi %7, %17 : vector<50x1xi32>
    %19 = arith.select %16, %18, %7 : vector<50x1xi1>, vector<50x1xi32>
    %c0_i32_6 = arith.constant 0 : i32
    %20 = vector.broadcast %c0_i32_6 : i32 to vector<50x1xi32>
    %21 = arith.cmpi eq, %19, %20 : vector<50x1xi32>
    %cst = arith.constant 0.000000e+00 : f32
    %22 = vector.shape_cast %21 : vector<50x1xi1> to vector<50x1xi1>
    %23 = vector.broadcast %22 : vector<50x1xi1> to vector<50x128xi1>
    %24 = vector.broadcast %cst : f32 to vector<50x128xf32>
    %25 = arith.select %23, %24, %2 : vector<50x128xi1>, vector<50x128xf32>
    %c1_i32_7 = arith.constant 1 : i32
    %26 = vector.broadcast %c1_i32_7 : i32 to vector<50x1xi32>
    %27 = arith.cmpi eq, %19, %26 : vector<50x1xi32>
    %cst_8 = arith.constant 0.000000e+00 : f32
    %28 = vector.shape_cast %27 : vector<50x1xi1> to vector<50x1xi1>
    %29 = vector.broadcast %28 : vector<50x1xi1> to vector<50x128xi1>
    %30 = vector.broadcast %cst_8 : f32 to vector<50x128xf32>
    %31 = arith.select %29, %30, %2 : vector<50x128xi1>, vector<50x128xf32>
    %32 = vector.extract_strided_slice %25 {offsets = [0, 0], sizes = [32, 128], strides = [1, 1]} : vector<50x128xf32> to vector<32x128xf32>
    %33 = vector.extract_strided_slice %2 {offsets = [1, 0], sizes = [32, 128], strides = [1, 1]} : vector<50x128xf32> to vector<32x128xf32>
    %34 = vector.extract_strided_slice %31 {offsets = [2, 0], sizes = [32, 128], strides = [1, 1]} : vector<50x128xf32> to vector<32x128xf32>
    %35 = vector.extract_strided_slice %25 {offsets = [8, 0], sizes = [32, 128], strides = [1, 1]} : vector<50x128xf32> to vector<32x128xf32>
    %36 = vector.extract_strided_slice %2 {offsets = [9, 0], sizes = [32, 128], strides = [1, 1]} : vector<50x128xf32> to vector<32x128xf32>
    %37 = vector.extract_strided_slice %31 {offsets = [10, 0], sizes = [32, 128], strides = [1, 1]} : vector<50x128xf32> to vector<32x128xf32>
    %38 = vector.extract_strided_slice %25 {offsets = [16, 0], sizes = [32, 128], strides = [1, 1]} : vector<50x128xf32> to vector<32x128xf32>
    %39 = vector.extract_strided_slice %2 {offsets = [17, 0], sizes = [32, 128], strides = [1, 1]} : vector<50x128xf32> to vector<32x128xf32>
    %40 = vector.extract_strided_slice %31 {offsets = [18, 0], sizes = [32, 128], strides = [1, 1]} : vector<50x128xf32> to vector<32x128xf32>
    %41 = tpu.concatenate %32, %33, %34, %35, %36, %37, %38, %39, %40 in 1 : vector<32x128xf32>, vector<32x128xf32>, vector<32x128xf32>, vector<32x128xf32>, vector<32x128xf32>, vector<32x128xf32>, vector<32x128xf32>, vector<32x128xf32>, vector<32x128xf32> -> vector<32x1152xf32>
    %42 = arith.truncf %41 : vector<32x1152xf32> to vector<32x1152xbf16>
    %c0_9 = arith.constant 0 : index
    %c0_10 = arith.constant 0 : index
    %43 = vector.load %arg3[%c0_9, %c0_10] : memref<1152x32xbf16, #tpu.memory_space<vmem>>, vector<1152x32xbf16>
    %cst_11 = arith.constant dense<0.000000e+00> : vector<32x32xf32>
    %44 = tpu.matmul %42, %43, %cst_11 {dimension_numbers = #tpu.dot_dimension_numbers<[1], [0], [0], [1], [0, 0, 1, 1], [], []>} : vector<32x1152xbf16>, vector<1152x32xbf16>, vector<32x32xf32> -> vector<32x32xf32>
    %c0_12 = arith.constant 0 : index
    %c0_13 = arith.constant 0 : index
    %45 = vector.load %arg4[%c0_12, %c0_13] : memref<1x32xf32, #tpu.memory_space<vmem>>, vector<1x32xf32>
    %46 = vector.broadcast %45 : vector<1x32xf32> to vector<32x32xf32>
    %47 = arith.addf %44, %46 : vector<32x32xf32>
    %cst_14 = arith.constant 0.000000e+00 : f32
    %48 = vector.broadcast %cst_14 : f32 to vector<32x32xf32>
    %49 = arith.maximumf %47, %48 : vector<32x32xf32>
    %50 = arith.truncf %49 : vector<32x32xf32> to vector<32x32xbf16>
    %c0_15 = arith.constant 0 : index
    %c0_16 = arith.constant 0 : index
    %51 = vector.load %arg5[%c0_15, %c0_16] : memref<32x128xbf16, #tpu.memory_space<vmem>>, vector<32x128xbf16>
    %cst_17 = arith.constant dense<0.000000e+00> : vector<32x128xf32>
    %52 = tpu.matmul %50, %51, %cst_17 {dimension_numbers = #tpu.dot_dimension_numbers<[1], [0], [0], [1], [0, 0, 1, 1], [], []>} : vector<32x32xbf16>, vector<32x128xbf16>, vector<32x128xf32> -> vector<32x128xf32>
    %c0_18 = arith.constant 0 : index
    %c0_19 = arith.constant 0 : index
    %53 = vector.load %arg6[%c0_18, %c0_19] : memref<1x128xf32, #tpu.memory_space<vmem>>, vector<1x128xf32>
    %54 = vector.broadcast %53 : vector<1x128xf32> to vector<32x128xf32>
    %55 = arith.addf %52, %54 : vector<32x128xf32>
    %c0_20 = arith.constant 0 : index
    %c0_21 = arith.constant 0 : index
    %c0_22 = arith.constant 0 : index
    %c0_23 = arith.constant 0 : index
    %56 = vector.load %arg7[%c0_20, %c0_21, %c0_22, %c0_23] : memref<1x1x32x128xf32, #tpu.memory_space<vmem>>, vector<1x1x32x128xf32>
    %57 = vector.shape_cast %56 : vector<1x1x32x128xf32> to vector<32x128xf32>
    %58 = vector.shape_cast %55 : vector<32x128xf32> to vector<1x1x32x128xf32>
    tpu.vector_store %arg7[%c0_20, %c0_21, %c0_22, %c0_23], %58 {strides = array<i32>} : memref<1x1x32x128xf32, #tpu.memory_space<vmem>>, vector<1x1x32x128xf32>,
    return
  }
  func.func @transform_0(%arg0: i32, %arg1: i32) -> (i32, i32, i32, i32) {
    %c0_i32 = arith.constant 0 : i32
    %c0_i32_0 = arith.constant 0 : i32
    %c0_i32_1 = arith.constant 0 : i32
    return %arg0, %arg1, %c0_i32, %c0_i32_0 : i32, i32, i32, i32
  }
  func.func @transform_1(%arg0: i32, %arg1: i32) -> (i32, i32) {
    %c0_i32 = arith.constant 0 : i32
    %c0_i32_0 = arith.constant 0 : i32
    %c0_i32_1 = arith.constant 0 : i32
    return %c0_i32, %c0_i32_0 : i32, i32
  }
  func.func @transform_2(%arg0: i32, %arg1: i32) -> (i32, i32) {
    %c0_i32 = arith.constant 0 : i32
    %c0_i32_0 = arith.constant 0 : i32
    %c0_i32_1 = arith.constant 0 : i32
    return %c0_i32, %c0_i32_0 : i32, i32
  }
  func.func @transform_3(%arg0: i32, %arg1: i32) -> (i32, i32) {
    %c0_i32 = arith.constant 0 : i32
    %c0_i32_0 = arith.constant 0 : i32
    %c0_i32_1 = arith.constant 0 : i32
    return %c0_i32, %c0_i32_0 : i32, i32
  }
  func.func @transform_4(%arg0: i32, %arg1: i32) -> (i32, i32) {
    %c0_i32 = arith.constant 0 : i32
    %c0_i32_0 = arith.constant 0 : i32
    %c0_i32_1 = arith.constant 0 : i32
    return %c0_i32, %c0_i32_0 : i32, i32
  }
  func.func @transform_5(%arg0: i32, %arg1: i32) -> (i32, i32, i32, i32) {
    %c0_i32 = arith.constant 0 : i32
    %c0_i32_0 = arith.constant 0 : i32
    %c0_i32_1 = arith.constant 0 : i32
    return %arg0, %arg1, %c0_i32, %c0_i32_0 : i32, i32, i32, i32
  }
}

module attributes {stable_mosaic.version = 11 : i64} {
  func.func @_rpn_tile_kernel(%arg0: i32, %arg1: i32, %arg2: memref<1x1x50x128xbf16, #tpu.memory_space<vmem>>, %arg3: memref<1152x32xbf16, #tpu.memory_space<vmem>>, %arg4: memref<1x32xf32, #tpu.memory_space<vmem>>, %arg5: memref<32x128xbf16, #tpu.memory_space<vmem>>, %arg6: memref<1x128xf32, #tpu.memory_space<vmem>>, %arg7: memref<1x1x32x128xf32, #tpu.memory_space<vmem>>) attributes {dimension_semantics = [#tpu.dimension_semantics<parallel>, #tpu.dimension_semantics<parallel>], iteration_bounds = array<i64: 2, 2>, scalar_prefetch = 0 : i64, scratch_operands = 0 : i64, tpu.core_type = #tpu.core_type<tc>, window_params = [{transform_indices = @transform_0, window_bounds = array<i64: 1, 1, 50, 128>}, {pipeline_mode = #tpu.pipeline_mode<synchronous>, transform_indices = @transform_1, window_bounds = array<i64: 1152, 32>}, {pipeline_mode = #tpu.pipeline_mode<synchronous>, transform_indices = @transform_2, window_bounds = array<i64: 1, 32>}, {pipeline_mode = #tpu.pipeline_mode<synchronous>, transform_indices = @transform_3, window_bounds = array<i64: 32, 128>}, {pipeline_mode = #tpu.pipeline_mode<synchronous>, transform_indices = @transform_4, window_bounds = array<i64: 1, 128>}, {transform_indices = @transform_5, window_bounds = array<i64: 1, 1, 32, 128>}]} {
    %c0 = arith.constant 0 : index
    %c0_0 = arith.constant 0 : index
    %c0_1 = arith.constant 0 : index
    %c0_2 = arith.constant 0 : index
    %0 = vector.load %arg2[%c0, %c0_0, %c0_1, %c0_2] : memref<1x1x50x128xbf16, #tpu.memory_space<vmem>>, vector<1x1x50x128xbf16>
    %1 = vector.shape_cast %0 : vector<1x1x50x128xbf16> to vector<50x128xbf16>
    %2 = arith.extf %1 : vector<50x128xbf16> to vector<50x128xf32>
    %3 = tpu.iota {dimensions = array<i32: 0>} : vector<50x1xi32>
    %c8_i32 = arith.constant 8 : i32
    %c0_i32 = arith.constant 0 : i32
    %4 = arith.cmpi eq, %c8_i32, %c0_i32 : i32
    %c1_i32 = arith.constant 1 : i32
    %5 = arith.select %4, %c1_i32, %c8_i32 : i32
    %6 = vector.broadcast %5 : i32 to vector<50x1xi32>
    %7 = arith.remsi %3, %6 : vector<50x1xi32>
    %c0_i32_3 = arith.constant 0 : i32
    %8 = vector.broadcast %c0_i32_3 : i32 to vector<50x1xi32>
    %9 = arith.cmpi ne, %7, %8 : vector<50x1xi32>
    %c0_i32_4 = arith.constant 0 : i32
    %10 = vector.broadcast %c0_i32_4 : i32 to vector<50x1xi32>
    %11 = arith.cmpi slt, %7, %10 : vector<50x1xi32>
    %c0_i32_5 = arith.constant 0 : i32
    %12 = arith.cmpi slt, %5, %c0_i32_5 : i32
    %13 = vector.broadcast %12 : i1 to vector<50x1xi1>
    %14 = vector.broadcast %13 : vector<50x1xi1> to vector<50x1xi1>
    %15 = arith.xori %11, %14 : vector<50x1xi1>
    %16 = arith.andi %15, %9 : vector<50x1xi1>
    %17 = vector.broadcast %5 : i32 to vector<50x1xi32>
    %18 = arith.addi %7, %17 : vector<50x1xi32>
    %19 = arith.select %16, %18, %7 : vector<50x1xi1>, vector<50x1xi32>
    %c0_i32_6 = arith.constant 0 : i32
    %20 = vector.broadcast %c0_i32_6 : i32 to vector<50x1xi32>
    %21 = arith.cmpi eq, %19, %20 : vector<50x1xi32>
    %cst = arith.constant 0.000000e+00 : f32
    %22 = vector.shape_cast %21 : vector<50x1xi1> to vector<50x1xi1>
    %23 = vector.broadcast %22 : vector<50x1xi1> to vector<50x128xi1>
    %24 = vector.broadcast %cst : f32 to vector<50x128xf32>
    %25 = arith.select %23, %24, %2 : vector<50x128xi1>, vector<50x128xf32>
    %c1_i32_7 = arith.constant 1 : i32
    %26 = vector.broadcast %c1_i32_7 : i32 to vector<50x1xi32>
    %27 = arith.cmpi eq, %19, %26 : vector<50x1xi32>
    %cst_8 = arith.constant 0.000000e+00 : f32
    %28 = vector.shape_cast %27 : vector<50x1xi1> to vector<50x1xi1>
    %29 = vector.broadcast %28 : vector<50x1xi1> to vector<50x128xi1>
    %30 = vector.broadcast %cst_8 : f32 to vector<50x128xf32>
    %31 = arith.select %29, %30, %2 : vector<50x128xi1>, vector<50x128xf32>
    %32 = vector.extract_strided_slice %25 {offsets = [0, 0], sizes = [32, 128], strides = [1, 1]} : vector<50x128xf32> to vector<32x128xf32>
    %33 = vector.extract_strided_slice %2 {offsets = [1, 0], sizes = [32, 128], strides = [1, 1]} : vector<50x128xf32> to vector<32x128xf32>
    %34 = vector.extract_strided_slice %31 {offsets = [2, 0], sizes = [32, 128], strides = [1, 1]} : vector<50x128xf32> to vector<32x128xf32>
    %35 = vector.extract_strided_slice %25 {offsets = [8, 0], sizes = [32, 128], strides = [1, 1]} : vector<50x128xf32> to vector<32x128xf32>
    %36 = vector.extract_strided_slice %2 {offsets = [9, 0], sizes = [32, 128], strides = [1, 1]} : vector<50x128xf32> to vector<32x128xf32>
    %37 = vector.extract_strided_slice %31 {offsets = [10, 0], sizes = [32, 128], strides = [1, 1]} : vector<50x128xf32> to vector<32x128xf32>
    %38 = vector.extract_strided_slice %25 {offsets = [16, 0], sizes = [32, 128], strides = [1, 1]} : vector<50x128xf32> to vector<32x128xf32>
    %39 = vector.extract_strided_slice %2 {offsets = [17, 0], sizes = [32, 128], strides = [1, 1]} : vector<50x128xf32> to vector<32x128xf32>
    %40 = vector.extract_strided_slice %31 {offsets = [18, 0], sizes = [32, 128], strides = [1, 1]} : vector<50x128xf32> to vector<32x128xf32>
    %41 = tpu.concatenate %32, %33, %34, %35, %36, %37, %38, %39, %40 in 1 : vector<32x128xf32>, vector<32x128xf32>, vector<32x128xf32>, vector<32x128xf32>, vector<32x128xf32>, vector<32x128xf32>, vector<32x128xf32>, vector<32x128xf32>, vector<32x128xf32> -> vector<32x1152xf32>
    %42 = arith.truncf %41 : vector<32x1152xf32> to vector<32x1152xbf16>
    %c0_9 = arith.constant 0 : index
    %c0_10 = arith.constant 0 : index
    %43 = vector.load %arg3[%c0_9, %c0_10] : memref<1152x32xbf16, #tpu.memory_space<vmem>>, vector<1152x32xbf16>
    %cst_11 = arith.constant dense<0.000000e+00> : vector<32x32xf32>
    %44 = tpu.matmul %42, %43, %cst_11 {dimension_numbers = #tpu.dot_dimension_numbers<[1], [0], [0], [1], [0, 0, 1, 1], [], []>} : vector<32x1152xbf16>, vector<1152x32xbf16>, vector<32x32xf32> -> vector<32x32xf32>
    %c0_12 = arith.constant 0 : index
    %c0_13 = arith.constant 0 : index
    %45 = vector.load %arg4[%c0_12, %c0_13] : memref<1x32xf32, #tpu.memory_space<vmem>>, vector<1x32xf32>
    %46 = vector.broadcast %45 : vector<1x32xf32> to vector<32x32xf32>
    %47 = arith.addf %44, %46 : vector<32x32xf32>
    %cst_14 = arith.constant 0.000000e+00 : f32
    %48 = vector.broadcast %cst_14 : f32 to vector<32x32xf32>
    %49 = arith.maximumf %47, %48 : vector<32x32xf32>
    %50 = arith.truncf %49 : vector<32x32xf32> to vector<32x32xbf16>
    %c0_15 = arith.constant 0 : index
    %c0_16 = arith.constant 0 : index
    %51 = vector.load %arg5[%c0_15, %c0_16] : memref<32x128xbf16, #tpu.memory_space<vmem>>, vector<32x128xbf16>
    %cst_17 = arith.constant dense<0.000000e+00> : vector<32x128xf32>
    %52 = tpu.matmul %50, %51, %cst_17 {dimension_numbers = #tpu.dot_dimension_numbers<[1], [0], [0], [1], [0, 0, 1, 1], [], []>} : vector<32x32xbf16>, vector<32x128xbf16>, vector<32x128xf32> -> vector<32x128xf32>
    %c0_18 = arith.constant 0 : index
    %c0_19 = arith.constant 0 : index
    %53 = vector.load %arg6[%c0_18, %c0_19] : memref<1x128xf32, #tpu.memory_space<vmem>>, vector<1x128xf32>
    %54 = vector.broadcast %53 : vector<1x128xf32> to vector<32x128xf32>
    %55 = arith.addf %52, %54 : vector<32x128xf32>
    %c0_20 = arith.constant 0 : index
    %c0_21 = arith.constant 0 : index
    %c0_22 = arith.constant 0 : index
    %c0_23 = arith.constant 0 : index
    %56 = vector.load %arg7[%c0_20, %c0_21, %c0_22, %c0_23] : memref<1x1x32x128xf32, #tpu.memory_space<vmem>>, vector<1x1x32x128xf32>
    %57 = vector.shape_cast %56 : vector<1x1x32x128xf32> to vector<32x128xf32>
    %58 = vector.shape_cast %55 : vector<32x128xf32> to vector<1x1x32x128xf32>
    tpu.vector_store %arg7[%c0_20, %c0_21, %c0_22, %c0_23], %58 {strides = array<i32>} : memref<1x1x32x128xf32, #tpu.memory_space<vmem>>, vector<1x1x32x128xf32>,
    return
  }
  func.func @transform_0(%arg0: i32, %arg1: i32) -> (i32, i32, i32, i32) {
    %c0_i32 = arith.constant 0 : i32
    %c0_i32_0 = arith.constant 0 : i32
    %c0_i32_1 = arith.constant 0 : i32
    return %arg0, %arg1, %c0_i32, %c0_i32_0 : i32, i32, i32, i32
  }
  func.func @transform_1(%arg0: i32, %arg1: i32) -> (i32, i32) {
    %c0_i32 = arith.constant 0 : i32
    %c0_i32_0 = arith.constant 0 : i32
    %c0_i32_1 = arith.constant 0 : i32
    return %c0_i32, %c0_i32_0 : i32, i32
  }
  func.func @transform_2(%arg0: i32, %arg1: i32) -> (i32, i32) {
    %c0_i32 = arith.constant 0 : i32
    %c0_i32_0 = arith.constant 0 : i32
    %c0_i32_1 = arith.constant 0 : i32
    return %c0_i32, %c0_i32_0 : i32, i32
  }
  func.func @transform_3(%arg0: i32, %arg1: i32) -> (i32, i32) {
    %c0_i32 = arith.constant 0 : i32
    %c0_i32_0 = arith.constant 0 : i32
    %c0_i32_1 = arith.constant 0 : i32
    return %c0_i32, %c0_i32_0 : i32, i32
  }
  func.func @transform_4(%arg0: i32, %arg1: i32) -> (i32, i32) {
    %c0_i32 = arith.constant 0 : i32
    %c0_i32_0 = arith.constant 0 : i32
    %c0_i32_1 = arith.constant 0 : i32
    return %c0_i32, %c0_i32_0 : i32, i32
  }
  func.func @transform_5(%arg0: i32, %arg1: i32) -> (i32, i32, i32, i32) {
    %c0_i32 = arith.constant 0 : i32
    %c0_i32_0 = arith.constant 0 : i32
    %c0_i32_1 = arith.constant 0 : i32
    return %arg0, %arg1, %c0_i32, %c0_i32_0 : i32, i32, i32, i32
  }
}

</mosaic_0001>

<llo_original>
// kernel: tpu_custom_call.1
$region0: #{tpu_custom_call.1}
  #allocation0 [shape = 'u32[]', space=smem, size = 0x4, offset = 0x4, fixed_abs, tag = 'smem constant byte address 0x4 - core index']
  #allocation1 [shape = 'u32[144,128]{1,0:T(1,128)}', space=vmem, size = 0x12000, scoped, tag = 'internal scratch']
  %s0 = inlined_call_operand.vmem [shape: bf16[2,2,50,128], index: 0, kind: input, shape index: {}]
  %s1 = inlined_call_operand.vmem [shape: bf16[1152,32], index: 1, kind: input, shape index: {}]
  %s2 = inlined_call_operand.vmem [shape: f32[1,32], index: 2, kind: input, shape index: {}]
  %s3 = inlined_call_operand.vmem [shape: bf16[32,128], index: 3, kind: input, shape index: {}]
  %s4 = inlined_call_operand.vmem [shape: f32[1,128], index: 4, kind: input, shape index: {}]
  %s5 = inlined_call_operand.hbm [shape: f32[2,2,32,128], index: 5, kind: output, shape index: {}]
  %s6 = sld [smem:[#allocation0]]
  $region53: #{tpu_custom_call.1} parent=0
    _
  %s8 = ssub.s32 1, %s6
  %s9 = scalar_select 0, %s8, %s6
  $region1: #{tpu_custom_call.1} parent=0
    #allocation2 [shape = 'u8[32768]{0}', space=vmem, size = 0x8000, scoped, tag = 'output window, operand 0']
    #allocation3 [shape = 's32[2]{0}', space=sflag, size = 0x8, scoped, tag = 'scoped memory for tpu_custom_call.1']
    %10 = vsyncpa [#allocation3], 0
    %s11 = scalar_lea.sflag [#allocation3], 1
    %12 = vsyncpa %s11, 0
    loop: start=0, step=1, limit=6
    $region2: #{tpu_custom_call.1} parent=1 // loop_pre_header
      _
    $region3: #{tpu_custom_call.1} parent=1 // loop_header
      %s14 = sphi 0, %s18
      %p15 = scmp.ge.s32.totalorder %s14, 6
      %s21 = sphi 0, %s33
      %s22 = sphi 0, %s29
      %s23 = sphi 0, %s21
      %s24 = sphi 0, %s22
      %s25 = sphi 0, %s23
      %s26 = sphi 0, %s24
      %s38 = sphi 0, %s40
      %s41 = sphi 0, %s38
      %s42 = sphi 0, %s41
      %s58 = sphi 0, %s42
      %s62 = sphi 0, %s62
      %s64 = sphi 0, %s62
      %s65 = sphi 0, %s64
      %s79 = sphi 0, %s65
      %s83 = sphi 0, %s83
      %s85 = sphi 0, %s83
      %s86 = sphi 0, %s85
      %s100 = sphi 0, %s86
      %s104 = sphi 0, %s104
      %s106 = sphi 0, %s104
      %s107 = sphi 0, %s106
      %s121 = sphi 0, %s107
      %s125 = sphi 0, %s125
      %s127 = sphi 0, %s125
      %s128 = sphi 0, %s127
      %s142 = sphi 0, %s128
      %s150 = sphi 0, %s152
      %s153 = sphi 0, %s150
      %s154 = sphi 0, %s153
      %s170 = sphi 0, %s154
    $region4: #{tpu_custom_call.1} parent=1 // loop_header_branch
      %17 = sbr.rel (%p15) target = $region8
    $region5: #{tpu_custom_call.1} parent=1 // loop_body
      %s19 = ssub.s32 %s14, 1
      %s20 = ssub.s32 %s14, 2
      %s27 = sadd.s32 1, %s22
      %p28 = scmp.ge.s32.totalorder %s27, 2
      %s29 = scalar_select %p28, 0, %s27
      %s30 = sadd.s32 1, %s21
      %s31 = scalar_select %p28, %s30, %s21
      %p32 = scmp.ge.s32.totalorder %s31, 2
      %s33 = scalar_select %p32, 0, %s31
      %s34 = ssub.s32 %s21, %s33
      %s35 = ssub.s32 %s22, %s29
      %s36 = sor.u32 %s34, %s35
      %p37 = scmp.eq.s32.totalorder %s36, 0
      %s39 = sadd.s32 %s38, 1
      %s40 = scalar_select %p37, %s38, %s39
      %p43 = pneg %p37
      %p44 = scmp.eq.s32.totalorder %s14, 3
      %p45 = por %p43, %p44
      %p46 = scmp.ne.s32.totalorder %s38, %s41
      %p47 = scmp.eq.s32.totalorder %s14, 0
      %p48 = por %p46, %p47
      %p49 = scmp.ne.s32.totalorder %s38, %s41
      %p50 = scmp.eq.s32.totalorder %s19, 3
      %p51 = por %p49, %p50
      %p52 = scmp.ne.s32.totalorder %s41, %s42
      %p53 = scmp.eq.s32.totalorder %s19, 0
      %p54 = por %p52, %p53
      %p55 = scmp.ne.s32.totalorder %s41, %s42
      %p56 = scmp.eq.s32.totalorder %s20, 3
      %p57 = por %p55, %p56
      %p59 = scmp.ne.s32.totalorder %s42, %s58
      %p60 = scmp.eq.s32.totalorder %s20, 0
      %p61 = por %p59, %p60
      %s63 = sadd.s32 %s62, 1
      %p66 = scmp.eq.s32.totalorder %s14, 3
      %p67 = scmp.ne.s32.totalorder %s62, %s64
      %p68 = scmp.eq.s32.totalorder %s14, 0
      %p69 = por %p67, %p68
      %p70 = scmp.ne.s32.totalorder %s62, %s64
      %p71 = scmp.eq.s32.totalorder %s19, 3
      %p72 = por %p70, %p71
      %p73 = scmp.ne.s32.totalorder %s64, %s65
      %p74 = scmp.eq.s32.totalorder %s19, 0
      %p75 = por %p73, %p74
      %p76 = scmp.ne.s32.totalorder %s64, %s65
      %p77 = scmp.eq.s32.totalorder %s20, 3
      %p78 = por %p76, %p77
      %p80 = scmp.ne.s32.totalorder %s65, %s79
      %p81 = scmp.eq.s32.totalorder %s20, 0
      %p82 = por %p80, %p81
      %s84 = sadd.s32 %s83, 1
      %p87 = scmp.eq.s32.totalorder %s14, 3
      %p88 = scmp.ne.s32.totalorder %s83, %s85
      %p89 = scmp.eq.s32.totalorder %s14, 0
      %p90 = por %p88, %p89
      %p91 = scmp.ne.s32.totalorder %s83, %s85
      %p92 = scmp.eq.s32.totalorder %s19, 3
      %p93 = por %p91, %p92
      %p94 = scmp.ne.s32.totalorder %s85, %s86
      %p95 = scmp.eq.s32.totalorder %s19, 0
      %p96 = por %p94, %p95
      %p97 = scmp.ne.s32.totalorder %s85, %s86
      %p98 = scmp.eq.s32.totalorder %s20, 3
      %p99 = por %p97, %p98
      %p101 = scmp.ne.s32.totalorder %s86, %s100
      %p102 = scmp.eq.s32.totalorder %s20, 0
      %p103 = por %p101, %p102
      %s105 = sadd.s32 %s104, 1
      %p108 = scmp.eq.s32.totalorder %s14, 3
      %p109 = scmp.ne.s32.totalorder %s104, %s106
      %p110 = scmp.eq.s32.totalorder %s14, 0
      %p111 = por %p109, %p110
      %p112 = scmp.ne.s32.totalorder %s104, %s106
      %p113 = scmp.eq.s32.totalorder %s19, 3
      %p114 = por %p112, %p113
      %p115 = scmp.ne.s32.totalorder %s106, %s107
      %p116 = scmp.eq.s32.totalorder %s19, 0
      %p117 = por %p115, %p116
      %p118 = scmp.ne.s32.totalorder %s106, %s107
      %p119 = scmp.eq.s32.totalorder %s20, 3
      %p120 = por %p118, %p119
      %p122 = scmp.ne.s32.totalorder %s107, %s121
      %p123 = scmp.eq.s32.totalorder %s20, 0
      %p124 = por %p122, %p123
      %s126 = sadd.s32 %s125, 1
      %p129 = scmp.eq.s32.totalorder %s14, 3
      %p130 = scmp.ne.s32.totalorder %s125, %s127
      %p131 = scmp.eq.s32.totalorder %s14, 0
      %p132 = por %p130, %p131
      %p133 = scmp.ne.s32.totalorder %s125, %s127
      %p134 = scmp.eq.s32.totalorder %s19, 3
      %p135 = por %p133, %p134
      %p136 = scmp.ne.s32.totalorder %s127, %s128
      %p137 = scmp.eq.s32.totalorder %s19, 0
      %p138 = por %p136, %p137
      %p139 = scmp.ne.s32.totalorder %s127, %s128
      %p140 = scmp.eq.s32.totalorder %s20, 3
      %p141 = por %p139, %p140
      %p143 = scmp.ne.s32.totalorder %s128, %s142
      %p144 = scmp.eq.s32.totalorder %s20, 0
      %p145 = por %p143, %p144
      %s146 = ssub.s32 %s21, %s33
      %s147 = ssub.s32 %s22, %s29
      %s148 = sor.u32 %s146, %s147
      %p149 = scmp.eq.s32.totalorder %s148, 0
      %s151 = sadd.s32 %s150, 1
      %s152 = scalar_select %p149, %s150, %s151
      %p155 = pneg %p149
      %p156 = scmp.eq.s32.totalorder %s14, 3
      %p157 = por %p155, %p156
      %p158 = scmp.ne.s32.totalorder %s150, %s153
      %p159 = scmp.eq.s32.totalorder %s14, 0
      %p160 = por %p158, %p159
      %p161 = scmp.ne.s32.totalorder %s150, %s153
      %p162 = scmp.eq.s32.totalorder %s19, 3
      %p163 = por %p161, %p162
      %p164 = scmp.ne.s32.totalorder %s153, %s154
      %p165 = scmp.eq.s32.totalorder %s19, 0
      %p166 = por %p164, %p165
      %p167 = scmp.ne.s32.totalorder %s153, %s154
      %p168 = scmp.eq.s32.totalorder %s20, 3
      %p169 = por %p167, %p168
      %p171 = scmp.ne.s32.totalorder %s154, %s170
      %p172 = scmp.eq.s32.totalorder %s20, 0
      %p173 = por %p171, %p172
      %p174 = scmp.le.s32.totalorder 1, %s14
      %p175 = scmp.lt.s32.totalorder %s14, 5
      %p176 = pnand %p174, %p175
      %p177 = pneg %p176
      // Predicated region
      $region9: #{tpu_custom_call.1} parent=5 // pred_check
        _
      $region10: #{tpu_custom_call.1} parent=5 // pred_check_branch
        %179 = sbr.rel (%p176) target = $region12
      $region11: #{tpu_custom_call.1} parent=5 // pred_region
        %s180 = ssub.s32 %s14, 1
        // Predicated region
        $region13: #{tpu_custom_call.1} parent=11 // pred_check
          %p181 = pneg %p75
        $region14: #{tpu_custom_call.1} parent=11 // pred_check_branch
          %183 = sbr.rel (%p181) target = $region16
        $region15: #{tpu_custom_call.1} parent=11 // pred_region
          _
        $region16: #{tpu_custom_call.1} parent=11 // pred_fallthru
          _
        // Predicated region
        $region17: #{tpu_custom_call.1} parent=11 // pred_check
          %p184 = pneg %p96
        $region18: #{tpu_custom_call.1} parent=11 // pred_check_branch
          %186 = sbr.rel (%p184) target = $region20
        $region19: #{tpu_custom_call.1} parent=11 // pred_region
          _
        $region20: #{tpu_custom_call.1} parent=11 // pred_fallthru
          _
        // Predicated region
        $region21: #{tpu_custom_call.1} parent=11 // pred_check
          %p187 = pneg %p117
        $region22: #{tpu_custom_call.1} parent=11 // pred_check_branch
          %189 = sbr.rel (%p187) target = $region24
        $region23: #{tpu_custom_call.1} parent=11 // pred_region
          _
        $region24: #{tpu_custom_call.1} parent=11 // pred_fallthru
          _
        // Predicated region
        $region25: #{tpu_custom_call.1} parent=11 // pred_check
          %p190 = pneg %p138
        $region26: #{tpu_custom_call.1} parent=11 // pred_check_branch
          %192 = sbr.rel (%p190) target = $region28
        $region27: #{tpu_custom_call.1} parent=11 // pred_region
          _
        $region28: #{tpu_custom_call.1} parent=11 // pred_fallthru
          _
      $region12: #{tpu_custom_call.1} parent=5 // pred_fallthru
        _
      %p193 = scmp.lt.s32.totalorder %s14, 4
      // Predicated region
      $region29: #{tpu_custom_call.1} parent=5 // pred_check
        %p194 = pneg %p193
      $region30: #{tpu_custom_call.1} parent=5 // pred_check_branch
        %196 = sbr.rel (%p194) target = $region32
      $region31: #{tpu_custom_call.1} parent=5 // pred_region
        // Predicated region
        $region33: #{tpu_custom_call.1} parent=31 // pred_check
          %p197 = pneg %p48
        $region34: #{tpu_custom_call.1} parent=31 // pred_check_branch
          %199 = sbr.rel (%p197) target = $region36
        $region35: #{tpu_custom_call.1} parent=31 // pred_region
          %p200 = scmp.lt.s32.totalorder %s21, 1
          %s201 = scalar_select %p200, %s21, 1
          %p202 = scmp.lt.s32.totalorder %s22, 1
          %s203 = scalar_select %p202, %s22, 1
          %s204 = smul.addr %s203, 7
          %s205 = smul.addr %s201, 14
          %s206 = sadd.s32 %s204, %s205
          %s207 = smul.addr %s206, 4
          %s208 = scalar_lea.vmem %s0, %s207
        $region36: #{tpu_custom_call.1} parent=31 // pred_fallthru
          _
      $region32: #{tpu_custom_call.1} parent=5 // pred_fallthru
        _
      %p209 = scmp.le.s32.totalorder 1, %s14
      %p210 = scmp.lt.s32.totalorder %s14, 5
      %p211 = pnand %p209, %p210
      %p212 = pneg %p211
      // Predicated region
      $region37: #{tpu_custom_call.1} parent=5 // pred_check
        _
      $region38: #{tpu_custom_call.1} parent=5 // pred_check_branch
        %214 = sbr.rel (%p211) target = $region40
      $region39: #{tpu_custom_call.1} parent=5 // pred_region
        %s215 = ssub.s32 %s14, 1
        %p216 = scmp.lt.s32.totalorder %s23, 1
        %s217 = scalar_select %p216, %s23, 1
        %p218 = scmp.lt.s32.totalorder %s24, 1
        %s219 = scalar_select %p218, %s24, 1
        %s220 = smul.addr %s219, 7
        %s221 = smul.addr %s217, 14
        %s222 = sadd.s32 %s220, %s221
        %s223 = smul.addr %s222, 4
        %s224 = scalar_lea.vmem %s0, %s223
        %p225 = pneg %p54
        %p226 = pneg %p51
        %p227 = pneg %p75
        %p228 = pneg %p72
        %p229 = pneg %p96
        %p230 = pneg %p93
        %p231 = pneg %p117
        %p232 = pneg %p114
        %p233 = pneg %p138
        %p234 = pneg %p135
        %p235 = pneg %p166
        %p236 = pneg %p163
        %s237 = sand.u32 %s153, 1
        %s238 = scalar_lea.sflag [#allocation3], %s237
        %s239 = sand.u32 %s153, 1
        %s240 = smul.addr %s239, 32
        %s241 = scalar_lea.vmem [#allocation2], %s240
        %p242 = scmp.lt.s32.totalorder %s23, 1
        %s243 = scalar_select %p242, %s23, 1
        %p244 = scmp.lt.s32.totalorder %s24, 1
        %s245 = scalar_select %p244, %s24, 1
        %s246 = smul.addr %s245, 7
        %s247 = smul.addr %s243, 14
        %s248 = sadd.s32 %s246, %s247
        %s249 = smul.addr %s248, 4
        %s250 = scalar_lea.vmem %s0, %s249
        %v252 = vld [vmem:[%s250] sm:$0xf]
        %v253 = vld [vmem:[%s250 + $0x4] sm:$0xf]
        %v254 = vld [vmem:[%s250 + $0x8] sm:$0xf]
        %v255 = vld [vmem:[%s250 + $0xc] sm:$0xf]
        %v256 = vld [vmem:[%s250 + $0x10] sm:$0xf]
        %v257 = vld [vmem:[%s250 + $0x14] sm:$0xf]
        %v258 = vld [vmem:[%s250 + $0x18] sm:$0x1]
        %v259 = vunpack.c.l.bf16 %v252
        %v260 = vunpack.c.l.bf16 %v253
        %v261 = vunpack.c.l.bf16 %v254
        %v262 = vunpack.c.l.bf16 %v255
        %v263 = vunpack.c.l.bf16 %v256
        %v264 = vunpack.c.l.bf16 %v257
        %v265 = vunpack.c.l.bf16 %v258
        %v266 = vlaneseq
        %v267 = vshrl.u32 %v266, 7
        %v268 = vadd.s32 %v267, 8
        %v269 = vadd.s32 %v267, 16
        %v270 = vadd.s32 %v267, 24
        %v271 = vadd.s32 %v267, 32
        %v272 = vadd.s32 %v267, 40
        %v273 = vadd.s32 %v267, 48
        %vm274 = vcmp.lt.s32.totalorder %v267, 0
        %v275 = vsub.s32 0, %v267
        %v276 = vsel %vm274, %v275, %v267
        %v277 = vshrl.u32 %v276, 3
        %v278 = vand.u32 %v276, 7
        %v279 = vsub.s32 0, %v278
        %v280 = vsel %vm274, %v279, %v278
        %vm281 = vcmp.lt.s32.totalorder %v268, 0
        %v282 = vsub.s32 0, %v268
        %v283 = vsel %vm281, %v282, %v268
        %v284 = vshrl.u32 %v283, 3
        %v285 = vand.u32 %v283, 7
        %v286 = vsub.s32 0, %v285
        %v287 = vsel %vm281, %v286, %v285
        %vm288 = vcmp.lt.s32.totalorder %v269, 0
        %v289 = vsub.s32 0, %v269
        %v290 = vsel %vm288, %v289, %v269
        %v291 = vshrl.u32 %v290, 3
        %v292 = vand.u32 %v290, 7
        %v293 = vsub.s32 0, %v292
        %v294 = vsel %vm288, %v293, %v292
        %vm295 = vcmp.lt.s32.totalorder %v270, 0
        %v296 = vsub.s32 0, %v270
        %v297 = vsel %vm295, %v296, %v270
        %v298 = vshrl.u32 %v297, 3
        %v299 = vand.u32 %v297, 7
        %v300 = vsub.s32 0, %v299
        %v301 = vsel %vm295, %v300, %v299
        %vm302 = vcmp.lt.s32.totalorder %v271, 0
        %v303 = vsub.s32 0, %v271
        %v304 = vsel %vm302, %v303, %v271
        %v305 = vshrl.u32 %v304, 3
        %v306 = vand.u32 %v304, 7
        %v307 = vsub.s32 0, %v306
        %v308 = vsel %vm302, %v307, %v306
        %vm309 = vcmp.lt.s32.totalorder %v272, 0
        %v310 = vsub.s32 0, %v272
        %v311 = vsel %vm309, %v310, %v272
        %v312 = vshrl.u32 %v311, 3
        %v313 = vand.u32 %v311, 7
        %v314 = vsub.s32 0, %v313
        %v315 = vsel %vm309, %v314, %v313
        %vm316 = vcmp.lt.s32.totalorder %v273, 0
        %v317 = vsub.s32 0, %v273
        %v318 = vsel %vm316, %v317, %v273
        %v319 = vshrl.u32 %v318, 3
        %v320 = vand.u32 %v318, 7
        %v321 = vsub.s32 0, %v320
        %v322 = vsel %vm316, %v321, %v320
        %vm323 = vcmp.ne.s32.totalorder %v280, 0
        %vm324 = vcmp.ne.s32.totalorder %v287, 0
        %vm325 = vcmp.ne.s32.totalorder %v294, 0
        %vm326 = vcmp.ne.s32.totalorder %v301, 0
        %vm327 = vcmp.ne.s32.totalorder %v308, 0
        %vm328 = vcmp.ne.s32.totalorder %v315, 0
        %vm329 = vcmp.ne.s32.totalorder %v322, 0
        %vm330 = vcmp.lt.s32.totalorder %v280, 0
        %vm331 = vcmp.lt.s32.totalorder %v287, 0
        %vm332 = vcmp.lt.s32.totalorder %v294, 0
        %vm333 = vcmp.lt.s32.totalorder %v301, 0
        %vm334 = vcmp.lt.s32.totalorder %v308, 0
        %vm335 = vcmp.lt.s32.totalorder %v315, 0
        %vm336 = vcmp.lt.s32.totalorder %v322, 0
        %vm337 = vmand %vm330, %vm323
        %vm338 = vmand %vm331, %vm324
        %vm339 = vmand %vm332, %vm325
        %vm340 = vmand %vm333, %vm326
        %vm341 = vmand %vm334, %vm327
        %vm342 = vmand %vm335, %vm328
        %vm343 = vmand %vm336, %vm329
        %v344 = vadd.s32 %v280, 8
        %v345 = vadd.s32 %v287, 8
        %v346 = vadd.s32 %v294, 8
        %v347 = vadd.s32 %v301, 8
        %v348 = vadd.s32 %v308, 8
        %v349 = vadd.s32 %v315, 8
        %v350 = vadd.s32 %v322, 8
        %v351 = vsel %vm337, %v344, %v280
        %v352 = vsel %vm338, %v345, %v287
        %v353 = vsel %vm339, %v346, %v294
        %v354 = vsel %vm340, %v347, %v301
        %v355 = vsel %vm341, %v348, %v308
        %v356 = vsel %vm342, %v349, %v315
        %v357 = vsel %vm343, %v350, %v322
        %vm358 = vcmp.eq.s32.totalorder %v351, 0
        %vm359 = vcmp.eq.s32.totalorder %v352, 0
        %vm360 = vcmp.eq.s32.totalorder %v353, 0
        %vm361 = vcmp.eq.s32.totalorder %v354, 0
        %vm362 = vcmp.eq.s32.totalorder %v355, 0
        %vm363 = vcmp.eq.s32.totalorder %v356, 0
        %v364 = vsel %vm358, 1, 0
        %v365 = vsel %vm359, 1, 0
        %v366 = vsel %vm360, 1, 0
        %v367 = vsel %vm361, 1, 0
        %v368 = vsel %vm362, 1, 0
        %v369 = vsel %vm363, 1, 0
        %vm370 = vcmp.eq.s32.totalorder %v364, 1
        %vm371 = vcmp.eq.s32.totalorder %v365, 1
        %vm372 = vcmp.eq.s32.totalorder %v366, 1
        %vm373 = vcmp.eq.s32.totalorder %v367, 1
        %vm374 = vcmp.eq.s32.totalorder %v368, 1
        %vm375 = vcmp.eq.s32.totalorder %v369, 1
        %v376 = vsel %vm370, 0.0, %v259
        %v377 = vsel %vm371, 0.0, %v260
        %v378 = vsel %vm372, 0.0, %v261
        %v379 = vsel %vm373, 0.0, %v262
        %v380 = vsel %vm374, 0.0, %v263
        %v381 = vsel %vm375, 0.0, %v264
        %vm382 = vcmp.eq.s32.totalorder %v351, 1
        %vm383 = vcmp.eq.s32.totalorder %v352, 1
        %vm384 = vcmp.eq.s32.totalorder %v353, 1
        %vm385 = vcmp.eq.s32.totalorder %v354, 1
        %vm386 = vcmp.eq.s32.totalorder %v355, 1
        %vm387 = vcmp.eq.s32.totalorder %v356, 1
        %vm388 = vcmp.eq.s32.totalorder %v357, 1
        %v389 = vsel %vm382, 1, 0
        %v390 = vsel %vm383, 1, 0
        %v391 = vsel %vm384, 1, 0
        %v392 = vsel %vm385, 1, 0
        %v393 = vsel %vm386, 1, 0
        %v394 = vsel %vm387, 1, 0
        %v395 = vsel %vm388, 1, 0
        %vm396 = vcmp.eq.s32.totalorder %v389, 1
        %vm397 = vcmp.eq.s32.totalorder %v390, 1
        %vm398 = vcmp.eq.s32.totalorder %v391, 1
        %vm399 = vcmp.eq.s32.totalorder %v392, 1
        %vm400 = vcmp.eq.s32.totalorder %v393, 1
        %vm401 = vcmp.eq.s32.totalorder %v394, 1
        %vm402 = vcmp.eq.s32.totalorder %v395, 1
        %v403 = vsel %vm396, 0.0, %v259
        %v404 = vsel %vm397, 0.0, %v260
        %v405 = vsel %vm398, 0.0, %v261
        %v406 = vsel %vm399, 0.0, %v262
        %v407 = vsel %vm400, 0.0, %v263
        %v408 = vsel %vm401, 0.0, %v264
        %v409 = vsel %vm402, 0.0, %v265
        %vm415 = vcmask 1046528
        %v416 = vrot.slane %v259, 1
        %v417 = vrot.slane %v260, 1
        %v418 = vsel %vm415, %v416, %v417
        %v419 = vrot.slane %v261, 1
        %v420 = vsel %vm415, %v417, %v419
        %v421 = vrot.slane %v262, 1
        %v422 = vsel %vm415, %v419, %v421
        %v423 = vrot.slane %v263, 1
        %v424 = vsel %vm415, %v421, %v423
        %vm434 = vcmask 1045504
        %v435 = vrot.slane %v403, 2
        %v436 = vrot.slane %v404, 2
        %v437 = vsel %vm434, %v435, %v436
        %v438 = vrot.slane %v405, 2
        %v439 = vsel %vm434, %v436, %v438
        %v440 = vrot.slane %v406, 2
        %v441 = vsel %vm434, %v438, %v440
        %v442 = vrot.slane %v407, 2
        %v443 = vsel %vm434, %v440, %v442
        %v449 = vrot.slane %v264, 1
        %v450 = vsel %vm415, %v423, %v449
        %v453 = vrot.slane %v408, 2
        %v454 = vsel %vm434, %v442, %v453
        %v457 = vrot.slane %v265, 1
        %v458 = vsel %vm415, %v449, %v457
        %v461 = vrot.slane %v409, 2
        %v462 = vsel %vm434, %v453, %v461
        %v464 = vpack.c.bf16 %v377, %v376
        %v465 = vpack.c.bf16 %v420, %v418
        %v466 = vpack.c.bf16 %v439, %v437
        %v467 = vpack.c.bf16 %v378, %v377
        %v468 = vpack.c.bf16 %v422, %v420
        %v469 = vpack.c.bf16 %v441, %v439
        %v470 = vpack.c.bf16 %v379, %v378
        %v471 = vpack.c.bf16 %v424, %v422
        %v472 = vpack.c.bf16 %v443, %v441
        %v473 = vpack.c.bf16 %v380, %v379
        %v474 = vpack.c.bf16 %v450, %v424
        %v475 = vpack.c.bf16 %v454, %v443
        %v476 = vpack.c.bf16 %v381, %v380
        %v477 = vpack.c.bf16 %v458, %v450
        %v478 = vpack.c.bf16 %v462, %v454
        %v479 = vld [vmem:[%s1] sm:$0xf]
        %v480 = vld [vmem:[%s1 + $0x4] sm:$0xf]
        %v481 = vld [vmem:[%s1 + $0x8] sm:$0xf]
        %v482 = vld [vmem:[%s1 + $0xc] sm:$0xf]
        %v483 = vld [vmem:[%s1 + $0x10] sm:$0xf]
        %v484 = vld [vmem:[%s1 + $0x14] sm:$0xf]
        %v485 = vld [vmem:[%s1 + $0x18] sm:$0xf]
        %v486 = vld [vmem:[%s1 + $0x1c] sm:$0xf]
        %v487 = vld [vmem:[%s1 + $0x20] sm:$0xf]
        %v488 = vld [vmem:[%s1 + $0x24] sm:$0xf]
        %v489 = vld [vmem:[%s1 + $0x28] sm:$0xf]
        %v490 = vld [vmem:[%s1 + $0x2c] sm:$0xf]
        %v491 = vld [vmem:[%s1 + $0x30] sm:$0xf]
        %v492 = vld [vmem:[%s1 + $0x34] sm:$0xf]
        %v493 = vld [vmem:[%s1 + $0x38] sm:$0xf]
        %v494 = vld [vmem:[%s1 + $0x3c] sm:$0xf]
        %v495 = vld [vmem:[%s1 + $0x40] sm:$0xf]
        %v496 = vld [vmem:[%s1 + $0x44] sm:$0xf]
        %v497 = vld [vmem:[%s1 + $0x48] sm:$0xf]
        %v498 = vld [vmem:[%s1 + $0x4c] sm:$0xf]
        %v499 = vld [vmem:[%s1 + $0x50] sm:$0xf]
        %v500 = vld [vmem:[%s1 + $0x54] sm:$0xf]
        %v501 = vld [vmem:[%s1 + $0x58] sm:$0xf]
        %v502 = vld [vmem:[%s1 + $0x5c] sm:$0xf]
        %v503 = vld [vmem:[%s1 + $0x60] sm:$0xf]
        %v504 = vld [vmem:[%s1 + $0x64] sm:$0xf]
        %v505 = vld [vmem:[%s1 + $0x68] sm:$0xf]
        %v506 = vld [vmem:[%s1 + $0x6c] sm:$0xf]
        %v507 = vld [vmem:[%s1 + $0x70] sm:$0xf]
        %v508 = vld [vmem:[%s1 + $0x74] sm:$0xf]
        %v509 = vld [vmem:[%s1 + $0x78] sm:$0xf]
        %v510 = vld [vmem:[%s1 + $0x7c] sm:$0xf]
        %v511 = vld [vmem:[%s1 + $0x80] sm:$0xf]
        %v512 = vld [vmem:[%s1 + $0x84] sm:$0xf]
        %v513 = vld [vmem:[%s1 + $0x88] sm:$0xf]
        %v514 = vld [vmem:[%s1 + $0x8c] sm:$0xf]
        %v515 = vld [vmem:[%s1 + $0x90] sm:$0xf]
        %v516 = vld [vmem:[%s1 + $0x94] sm:$0xf]
        %v517 = vld [vmem:[%s1 + $0x98] sm:$0xf]
        %v518 = vld [vmem:[%s1 + $0x9c] sm:$0xf]
        %v519 = vld [vmem:[%s1 + $0xa0] sm:$0xf]
        %v520 = vld [vmem:[%s1 + $0xa4] sm:$0xf]
        %v521 = vld [vmem:[%s1 + $0xa8] sm:$0xf]
        %v522 = vld [vmem:[%s1 + $0xac] sm:$0xf]
        %v523 = vld [vmem:[%s1 + $0xb0] sm:$0xf]
        %v524 = vld [vmem:[%s1 + $0xb4] sm:$0xf]
        %v525 = vld [vmem:[%s1 + $0xb8] sm:$0xf]
        %v526 = vld [vmem:[%s1 + $0xbc] sm:$0xf]
        %v527 = vld [vmem:[%s1 + $0xc0] sm:$0xf]
        %v528 = vld [vmem:[%s1 + $0xc4] sm:$0xf]
        %v529 = vld [vmem:[%s1 + $0xc8] sm:$0xf]
        %v530 = vld [vmem:[%s1 + $0xcc] sm:$0xf]
        %v531 = vld [vmem:[%s1 + $0xd0] sm:$0xf]
        %v532 = vld [vmem:[%s1 + $0xd4] sm:$0xf]
        %v533 = vld [vmem:[%s1 + $0xd8] sm:$0xf]
        %v534 = vld [vmem:[%s1 + $0xdc] sm:$0xf]
        %v535 = vld [vmem:[%s1 + $0xe0] sm:$0xf]
        %v536 = vld [vmem:[%s1 + $0xe4] sm:$0xf]
        %v537 = vld [vmem:[%s1 + $0xe8] sm:$0xf]
        %v538 = vld [vmem:[%s1 + $0xec] sm:$0xf]
        %v539 = vld [vmem:[%s1 + $0xf0] sm:$0xf]
        %v540 = vld [vmem:[%s1 + $0xf4] sm:$0xf]
        %v541 = vld [vmem:[%s1 + $0xf8] sm:$0xf]
        %v542 = vld [vmem:[%s1 + $0xfc] sm:$0xf]
        %v543 = vld [vmem:[%s1 + $0x100] sm:$0xf]
        %v544 = vld [vmem:[%s1 + $0x104] sm:$0xf]
        %v545 = vld [vmem:[%s1 + $0x108] sm:$0xf]
        %v546 = vld [vmem:[%s1 + $0x10c] sm:$0xf]
        %v547 = vld [vmem:[%s1 + $0x110] sm:$0xf]
        %v548 = vld [vmem:[%s1 + $0x114] sm:$0xf]
        %v549 = vld [vmem:[%s1 + $0x118] sm:$0xf]
        %v550 = vld [vmem:[%s1 + $0x11c] sm:$0xf]
        %v551 = vld [vmem:[%s1 + $0x120] sm:$0xf]
        %v552 = vld [vmem:[%s1 + $0x124] sm:$0xf]
        %v553 = vld [vmem:[%s1 + $0x128] sm:$0xf]
        %v554 = vld [vmem:[%s1 + $0x12c] sm:$0xf]
        %v555 = vld [vmem:[%s1 + $0x130] sm:$0xf]
        %v556 = vld [vmem:[%s1 + $0x134] sm:$0xf]
        %v557 = vld [vmem:[%s1 + $0x138] sm:$0xf]
        %v558 = vld [vmem:[%s1 + $0x13c] sm:$0xf]
        %v559 = vld [vmem:[%s1 + $0x140] sm:$0xf]
        %v560 = vld [vmem:[%s1 + $0x144] sm:$0xf]
        %v561 = vld [vmem:[%s1 + $0x148] sm:$0xf]
        %v562 = vld [vmem:[%s1 + $0x14c] sm:$0xf]
        %v563 = vld [vmem:[%s1 + $0x150] sm:$0xf]
        %v564 = vld [vmem:[%s1 + $0x154] sm:$0xf]
        %v565 = vld [vmem:[%s1 + $0x158] sm:$0xf]
        %v566 = vld [vmem:[%s1 + $0x15c] sm:$0xf]
        %v567 = vld [vmem:[%s1 + $0x160] sm:$0xf]
        %v568 = vld [vmem:[%s1 + $0x164] sm:$0xf]
        %v569 = vld [vmem:[%s1 + $0x168] sm:$0xf]
        %v570 = vld [vmem:[%s1 + $0x16c] sm:$0xf]
        %v571 = vld [vmem:[%s1 + $0x170] sm:$0xf]
        %v572 = vld [vmem:[%s1 + $0x174] sm:$0xf]
        %v573 = vld [vmem:[%s1 + $0x178] sm:$0xf]
        %v574 = vld [vmem:[%s1 + $0x17c] sm:$0xf]
        %v575 = vld [vmem:[%s1 + $0x180] sm:$0xf]
        %v576 = vld [vmem:[%s1 + $0x184] sm:$0xf]
        %v577 = vld [vmem:[%s1 + $0x188] sm:$0xf]
        %v578 = vld [vmem:[%s1 + $0x18c] sm:$0xf]
        %v579 = vld [vmem:[%s1 + $0x190] sm:$0xf]
        %v580 = vld [vmem:[%s1 + $0x194] sm:$0xf]
        %v581 = vld [vmem:[%s1 + $0x198] sm:$0xf]
        %v582 = vld [vmem:[%s1 + $0x19c] sm:$0xf]
        %v583 = vld [vmem:[%s1 + $0x1a0] sm:$0xf]
        %v584 = vld [vmem:[%s1 + $0x1a4] sm:$0xf]
        %v585 = vld [vmem:[%s1 + $0x1a8] sm:$0xf]
        %v586 = vld [vmem:[%s1 + $0x1ac] sm:$0xf]
        %v587 = vld [vmem:[%s1 + $0x1b0] sm:$0xf]
        %v588 = vld [vmem:[%s1 + $0x1b4] sm:$0xf]
        %v589 = vld [vmem:[%s1 + $0x1b8] sm:$0xf]
        %v590 = vld [vmem:[%s1 + $0x1bc] sm:$0xf]
        %v591 = vld [vmem:[%s1 + $0x1c0] sm:$0xf]
        %v592 = vld [vmem:[%s1 + $0x1c4] sm:$0xf]
        %v593 = vld [vmem:[%s1 + $0x1c8] sm:$0xf]
        %v594 = vld [vmem:[%s1 + $0x1cc] sm:$0xf]
        %v595 = vld [vmem:[%s1 + $0x1d0] sm:$0xf]
        %v596 = vld [vmem:[%s1 + $0x1d4] sm:$0xf]
        %v597 = vld [vmem:[%s1 + $0x1d8] sm:$0xf]
        %v598 = vld [vmem:[%s1 + $0x1dc] sm:$0xf]
        %v599 = vld [vmem:[%s1 + $0x1e0] sm:$0xf]
        %v600 = vld [vmem:[%s1 + $0x1e4] sm:$0xf]
        %v601 = vld [vmem:[%s1 + $0x1e8] sm:$0xf]
        %v602 = vld [vmem:[%s1 + $0x1ec] sm:$0xf]
        %v603 = vld [vmem:[%s1 + $0x1f0] sm:$0xf]
        %v604 = vld [vmem:[%s1 + $0x1f4] sm:$0xf]
        %v605 = vld [vmem:[%s1 + $0x1f8] sm:$0xf]
        %v606 = vld [vmem:[%s1 + $0x1fc] sm:$0xf]
        %v607 = vld [vmem:[%s1 + $0x200] sm:$0xf]
        %v608 = vld [vmem:[%s1 + $0x204] sm:$0xf]
        %v609 = vld [vmem:[%s1 + $0x208] sm:$0xf]
        %v610 = vld [vmem:[%s1 + $0x20c] sm:$0xf]
        %v611 = vld [vmem:[%s1 + $0x210] sm:$0xf]
        %v612 = vld [vmem:[%s1 + $0x214] sm:$0xf]
        %v613 = vld [vmem:[%s1 + $0x218] sm:$0xf]
        %v614 = vld [vmem:[%s1 + $0x21c] sm:$0xf]
        %v615 = vld [vmem:[%s1 + $0x220] sm:$0xf]
        %v616 = vld [vmem:[%s1 + $0x224] sm:$0xf]
        %v617 = vld [vmem:[%s1 + $0x228] sm:$0xf]
        %v618 = vld [vmem:[%s1 + $0x22c] sm:$0xf]
        %v619 = vld [vmem:[%s1 + $0x230] sm:$0xf]
        %v620 = vld [vmem:[%s1 + $0x234] sm:$0xf]
        %v621 = vld [vmem:[%s1 + $0x238] sm:$0xf]
        %v622 = vld [vmem:[%s1 + $0x23c] sm:$0xf]
        %v623 = vld [vmem:[%s2] sm:$0x1]
        %v625 = vlaneseq
        %v626 = vshrl.u32 %v625, 7
        %v627 = vsub.s32 0, %v626
        %v628 = vrot.slane %v623, %v627
        %v774 = vunpack.c.l.b16 %v479
        %v775 = vunpack.c.l.b16 %v480
        %v776 = vunpack.c.l.b16 %v481
        %v777 = vunpack.c.l.b16 %v482
        %v778 = vunpack.c.l.b16 %v483
        %v779 = vunpack.c.l.b16 %v484
        %v780 = vunpack.c.l.b16 %v485
        %v781 = vunpack.c.l.b16 %v486
        %v782 = vunpack.c.l.b16 %v487
        %v783 = vunpack.c.l.b16 %v488
        %v784 = vunpack.c.l.b16 %v489
        %v785 = vunpack.c.l.b16 %v490
        %v786 = vunpack.c.l.b16 %v491
        %v787 = vunpack.c.l.b16 %v492
        %v788 = vunpack.c.l.b16 %v493
        %v789 = vunpack.c.l.b16 %v494
        %v790 = vunpack.c.l.b16 %v495
        %v791 = vunpack.c.l.b16 %v496
        %v792 = vunpack.c.l.b16 %v497
        %v793 = vunpack.c.l.b16 %v498
        %v794 = vunpack.c.l.b16 %v499
        %v795 = vunpack.c.l.b16 %v500
        %v796 = vunpack.c.l.b16 %v501
        %v797 = vunpack.c.l.b16 %v502
        %v798 = vunpack.c.l.b16 %v503
        %v799 = vunpack.c.l.b16 %v504
        %v800 = vunpack.c.l.b16 %v505
        %v801 = vunpack.c.l.b16 %v506
        %v802 = vunpack.c.l.b16 %v507
        %v803 = vunpack.c.l.b16 %v508
        %v804 = vunpack.c.l.b16 %v509
        %v805 = vunpack.c.l.b16 %v510
        %v806 = vunpack.c.l.b16 %v511
        %v807 = vunpack.c.l.b16 %v512
        %v808 = vunpack.c.l.b16 %v513
        %v809 = vunpack.c.l.b16 %v514
        %v810 = vunpack.c.l.b16 %v515
        %v811 = vunpack.c.l.b16 %v516
        %v812 = vunpack.c.l.b16 %v517
        %v813 = vunpack.c.l.b16 %v518
        %v814 = vunpack.c.l.b16 %v519
        %v815 = vunpack.c.l.b16 %v520
        %v816 = vunpack.c.l.b16 %v521
        %v817 = vunpack.c.l.b16 %v522
        %v818 = vunpack.c.l.b16 %v523
        %v819 = vunpack.c.l.b16 %v524
        %v820 = vunpack.c.l.b16 %v525
        %v821 = vunpack.c.l.b16 %v526
        %v822 = vunpack.c.l.b16 %v527
        %v823 = vunpack.c.l.b16 %v528
        %v824 = vunpack.c.l.b16 %v529
        %v825 = vunpack.c.l.b16 %v530
        %v826 = vunpack.c.l.b16 %v531
        %v827 = vunpack.c.l.b16 %v532
        %v828 = vunpack.c.l.b16 %v533
        %v829 = vunpack.c.l.b16 %v534
        %v830 = vunpack.c.l.b16 %v535
        %v831 = vunpack.c.l.b16 %v536
        %v832 = vunpack.c.l.b16 %v537
        %v833 = vunpack.c.l.b16 %v538
        %v834 = vunpack.c.l.b16 %v539
        %v835 = vunpack.c.l.b16 %v540
        %v836 = vunpack.c.l.b16 %v541
        %v837 = vunpack.c.l.b16 %v542
        %v838 = vunpack.c.l.b16 %v543
        %v839 = vunpack.c.l.b16 %v544
        %v840 = vunpack.c.l.b16 %v545
        %v841 = vunpack.c.l.b16 %v546
        %v842 = vunpack.c.l.b16 %v547
        %v843 = vunpack.c.l.b16 %v548
        %v844 = vunpack.c.l.b16 %v549
        %v845 = vunpack.c.l.b16 %v550
        %v846 = vunpack.c.l.b16 %v551
        %v847 = vunpack.c.l.b16 %v552
        %v848 = vunpack.c.l.b16 %v553
        %v849 = vunpack.c.l.b16 %v554
        %v850 = vunpack.c.l.b16 %v555
        %v851 = vunpack.c.l.b16 %v556
        %v852 = vunpack.c.l.b16 %v557
        %v853 = vunpack.c.l.b16 %v558
        %v854 = vunpack.c.l.b16 %v559
        %v855 = vunpack.c.l.b16 %v560
        %v856 = vunpack.c.l.b16 %v561
        %v857 = vunpack.c.l.b16 %v562
        %v858 = vunpack.c.l.b16 %v563
        %v859 = vunpack.c.l.b16 %v564
        %v860 = vunpack.c.l.b16 %v565
        %v861 = vunpack.c.l.b16 %v566
        %v862 = vunpack.c.l.b16 %v567
        %v863 = vunpack.c.l.b16 %v568
        %v864 = vunpack.c.l.b16 %v569
        %v865 = vunpack.c.l.b16 %v570
        %v866 = vunpack.c.l.b16 %v571
        %v867 = vunpack.c.l.b16 %v572
        %v868 = vunpack.c.l.b16 %v573
        %v869 = vunpack.c.l.b16 %v574
        %v870 = vunpack.c.l.b16 %v575
        %v871 = vunpack.c.l.b16 %v576
        %v872 = vunpack.c.l.b16 %v577
        %v873 = vunpack.c.l.b16 %v578
        %v874 = vunpack.c.l.b16 %v579
        %v875 = vunpack.c.l.b16 %v580
        %v876 = vunpack.c.l.b16 %v581
        %v877 = vunpack.c.l.b16 %v582
        %v878 = vunpack.c.l.b16 %v583
        %v879 = vunpack.c.l.b16 %v584
        %v880 = vunpack.c.l.b16 %v585
        %v881 = vunpack.c.l.b16 %v586
        %v882 = vunpack.c.l.b16 %v587
        %v883 = vunpack.c.l.b16 %v588
        %v884 = vunpack.c.l.b16 %v589
        %v885 = vunpack.c.l.b16 %v590
        %v886 = vunpack.c.l.b16 %v591
        %v887 = vunpack.c.l.b16 %v592
        %v888 = vunpack.c.l.b16 %v593
        %v889 = vunpack.c.l.b16 %v594
        %v890 = vunpack.c.l.b16 %v595
        %v891 = vunpack.c.l.b16 %v596
        %v892 = vunpack.c.l.b16 %v597
        %v893 = vunpack.c.l.b16 %v598
        %v894 = vunpack.c.l.b16 %v599
        %v895 = vunpack.c.l.b16 %v600
        %v896 = vunpack.c.l.b16 %v601
        %v897 = vunpack.c.l.b16 %v602
        %v898 = vunpack.c.l.b16 %v603
        %v899 = vunpack.c.l.b16 %v604
        %v900 = vunpack.c.l.b16 %v605
        %v901 = vunpack.c.l.b16 %v606
        %v902 = vunpack.c.l.b16 %v607
        %v903 = vunpack.c.l.b16 %v608
        %v904 = vunpack.c.l.b16 %v609
        %v905 = vunpack.c.l.b16 %v610
        %v906 = vunpack.c.l.b16 %v611
        %v907 = vunpack.c.l.b16 %v612
        %v908 = vunpack.c.l.b16 %v613
        %v909 = vunpack.c.l.b16 %v614
        %v910 = vunpack.c.l.b16 %v615
        %v911 = vunpack.c.l.b16 %v616
        %v912 = vunpack.c.l.b16 %v617
        %v913 = vunpack.c.l.b16 %v618
        %v914 = vunpack.c.l.b16 %v619
        %v915 = vunpack.c.l.b16 %v620
        %v916 = vunpack.c.l.b16 %v621
        %v917 = vunpack.c.l.b16 %v622
        %v918 = vpack.c.b16 %v775, %v774
        %v919 = vpack.c.b16 %v777, %v776
        %v920 = vpack.c.b16 %v779, %v778
        %v921 = vpack.c.b16 %v781, %v780
        %v922 = vpack.c.b16 %v783, %v782
        %v923 = vpack.c.b16 %v785, %v784
        %v924 = vpack.c.b16 %v787, %v786
        %v925 = vpack.c.b16 %v789, %v788
        %v926 = vpack.c.b16 %v791, %v790
        %v927 = vpack.c.b16 %v793, %v792
        %v928 = vpack.c.b16 %v795, %v794
        %v929 = vpack.c.b16 %v797, %v796
        %v930 = vpack.c.b16 %v799, %v798
        %v931 = vpack.c.b16 %v801, %v800
        %v932 = vpack.c.b16 %v803, %v802
        %v933 = vpack.c.b16 %v805, %v804
        %v934 = vpack.c.b16 %v807, %v806
        %v935 = vpack.c.b16 %v809, %v808
        %v936 = vpack.c.b16 %v811, %v810
        %v937 = vpack.c.b16 %v813, %v812
        %v938 = vpack.c.b16 %v815, %v814
        %v939 = vpack.c.b16 %v817, %v816
        %v940 = vpack.c.b16 %v819, %v818
        %v941 = vpack.c.b16 %v821, %v820
        %v942 = vpack.c.b16 %v823, %v822
        %v943 = vpack.c.b16 %v825, %v824
        %v944 = vpack.c.b16 %v827, %v826
        %v945 = vpack.c.b16 %v829, %v828
        %v946 = vpack.c.b16 %v831, %v830
        %v947 = vpack.c.b16 %v833, %v832
        %v948 = vpack.c.b16 %v835, %v834
        %v949 = vpack.c.b16 %v837, %v836
        %v950 = vpack.c.b16 %v839, %v838
        %v951 = vpack.c.b16 %v841, %v840
        %v952 = vpack.c.b16 %v843, %v842
        %v953 = vpack.c.b16 %v845, %v844
        %v954 = vpack.c.b16 %v847, %v846
        %v955 = vpack.c.b16 %v849, %v848
        %v956 = vpack.c.b16 %v851, %v850
        %v957 = vpack.c.b16 %v853, %v852
        %v958 = vpack.c.b16 %v855, %v854
        %v959 = vpack.c.b16 %v857, %v856
        %v960 = vpack.c.b16 %v859, %v858
        %v961 = vpack.c.b16 %v861, %v860
        %v962 = vpack.c.b16 %v863, %v862
        %v963 = vpack.c.b16 %v865, %v864
        %v964 = vpack.c.b16 %v867, %v866
        %v965 = vpack.c.b16 %v869, %v868
        %v966 = vpack.c.b16 %v871, %v870
        %v967 = vpack.c.b16 %v873, %v872
        %v968 = vpack.c.b16 %v875, %v874
        %v969 = vpack.c.b16 %v877, %v876
        %v970 = vpack.c.b16 %v879, %v878
        %v971 = vpack.c.b16 %v881, %v880
        %v972 = vpack.c.b16 %v883, %v882
        %v973 = vpack.c.b16 %v885, %v884
        %v974 = vpack.c.b16 %v887, %v886
        %v975 = vpack.c.b16 %v889, %v888
        %v976 = vpack.c.b16 %v891, %v890
        %v977 = vpack.c.b16 %v893, %v892
        %v978 = vpack.c.b16 %v895, %v894
        %v979 = vpack.c.b16 %v897, %v896
        %v980 = vpack.c.b16 %v899, %v898
        %v981 = vpack.c.b16 %v901, %v900
        %v982 = vpack.c.b16 %v903, %v902
        %v983 = vpack.c.b16 %v905, %v904
        %v984 = vpack.c.b16 %v907, %v906
        %v985 = vpack.c.b16 %v909, %v908
        %v986 = vpack.c.b16 %v911, %v910
        %v987 = vpack.c.b16 %v913, %v912
        %v988 = vpack.c.b16 %v915, %v914
        %v989 = vpack.c.b16 %v917, %v916
        %1062 = vmatprep.subr.bf16.mxu0 0
        %1063 = vmatpush1.bf16.msra.mxu0 %v918
        %1064 = vmatprep.subr.bf16.mxu0 0
        %1065 = vmatpush1.bf16.msra.mxu0 %v919
        %1066 = vmatprep.subr.bf16.mxu0 0
        %1067 = vmatpush1.bf16.msra.mxu0 %v920
        %1068 = vmatprep.subr.bf16.mxu0 0
        %1069 = vmatpush1.bf16.msra.mxu0 %v921
        %1070 = vmatprep.subr.bf16.mxu0 0
        %1071 = vmatpush1.bf16.msra.mxu0 %v922
        %1072 = vmatprep.subr.bf16.mxu0 0
        %1073 = vmatpush1.bf16.msra.mxu0 %v923
        %1074 = vmatprep.subr.bf16.mxu0 0
        %1075 = vmatpush1.bf16.msra.mxu0 %v924
        %1076 = vmatprep.subr.bf16.mxu0 0
        %1077 = vmatpush1.bf16.msra.mxu0 %v925
        %1078 = vmatprep.subr.bf16.mxu0 0
        %1079 = vmatpush1.bf16.msra.mxu0 %v926
        %1080 = vmatprep.subr.bf16.mxu0 0
        %1081 = vmatpush1.bf16.msra.mxu0 %v927
        %1082 = vmatprep.subr.bf16.mxu0 0
        %1083 = vmatpush1.bf16.msra.mxu0 %v928
        %1084 = vmatprep.subr.bf16.mxu0 0
        %1085 = vmatpush1.bf16.msra.mxu0 %v929
        %1086 = vmatprep.subr.bf16.mxu0 0
        %1087 = vmatpush1.bf16.msra.mxu0 %v930
        %1088 = vmatprep.subr.bf16.mxu0 0
        %1089 = vmatpush1.bf16.msra.mxu0 %v931
        %1090 = vmatprep.subr.bf16.mxu0 0
        %1091 = vmatpush1.bf16.msra.mxu0 %v932
        %1092 = vmatprep.subr.bf16.mxu0 0
        %1093 = vmatpush1.bf16.msra.mxu0 %v933
        %1094 = vmatprep.mubr.bf16.mxu0 %v465
        %1095 = vmatmul.mubr.bf16.gmra.mrb[0].mxu0 %v464
        %v1096 = vpop.f32.mrb[0].mxu0
        %v1097 = vadd.f32 %v628, %v1096
        %v1098 = vpop.f32.mrb[0].mxu0
        %v1099 = vpop.f32.mrb[0].mxu0
        %v1100 = vadd.f32 %v628, %v1099
        %v1101 = vpop.f32.mrb[0].mxu0
        %1102 = vmatprep.mubr.bf16.mxu0 %v471
        %1103 = vmatmul.mubr.bf16.gmra.mrb[0].mxu0 %v470
        %v1104 = vpop.f32.mrb[0].mxu0
        %v1105 = vadd.f32 %v628, %v1104
        %v1106 = vpop.f32.mrb[0].mxu0
        %v1107 = vpop.f32.mrb[0].mxu0
        %v1108 = vadd.f32 %v628, %v1107
        %v1109 = vpop.f32.mrb[0].mxu0
        %1110 = vdwg.mxu0
        %1111 = vmatprep.subr.bf16.mxu0 0
        %1112 = vmatpush1.bf16.msra.mxu0 %v934
        %1113 = vmatprep.subr.bf16.mxu0 0
        %1114 = vmatpush1.bf16.msra.mxu0 %v935
        %1115 = vmatprep.subr.bf16.mxu0 0
        %1116 = vmatpush1.bf16.msra.mxu0 %v936
        %1117 = vmatprep.subr.bf16.mxu0 0
        %1118 = vmatpush1.bf16.msra.mxu0 %v937
        %1119 = vmatprep.subr.bf16.mxu0 0
        %1120 = vmatpush1.bf16.msra.mxu0 %v938
        %1121 = vmatprep.subr.bf16.mxu0 0
        %1122 = vmatpush1.bf16.msra.mxu0 %v939
        %1123 = vmatprep.subr.bf16.mxu0 0
        %1124 = vmatpush1.bf16.msra.mxu0 %v940
        %1125 = vmatprep.subr.bf16.mxu0 0
        %1126 = vmatpush1.bf16.msra.mxu0 %v941
        %1127 = vmatprep.subr.bf16.mxu0 0
        %1128 = vmatpush1.bf16.msra.mxu0 %v942
        %1129 = vmatprep.subr.bf16.mxu0 0
        %1130 = vmatpush1.bf16.msra.mxu0 %v943
        %1131 = vmatprep.subr.bf16.mxu0 0
        %1132 = vmatpush1.bf16.msra.mxu0 %v944
        %1133 = vmatprep.subr.bf16.mxu0 0
        %1134 = vmatpush1.bf16.msra.mxu0 %v945
        %1135 = vmatprep.subr.bf16.mxu0 0
        %1136 = vmatpush1.bf16.msra.mxu0 %v946
        %1137 = vmatprep.subr.bf16.mxu0 0
        %1138 = vmatpush1.bf16.msra.mxu0 %v947
        %1139 = vmatprep.subr.bf16.mxu0 0
        %1140 = vmatpush1.bf16.msra.mxu0 %v948
        %1141 = vmatprep.subr.bf16.mxu0 0
        %1142 = vmatpush1.bf16.msra.mxu0 %v949
        %1143 = vmatprep.mubr.bf16.mxu0 %v467
        %1144 = vmatmul.mubr.bf16.gmra.mrb[0].mxu0 %v466
        %v1145 = vpop.f32.mrb[0].mxu0
        %v1146 = vadd.f32 %v1097, %v1145
        %v1147 = vpop.f32.mrb[0].mxu0
        %v1148 = vpop.f32.mrb[0].mxu0
        %v1149 = vadd.f32 %v1100, %v1148
        %v1150 = vpop.f32.mrb[0].mxu0
        %1151 = vmatprep.mubr.bf16.mxu0 %v473
        %1152 = vmatmul.mubr.bf16.gmra.mrb[0].mxu0 %v472
        %v1153 = vpop.f32.mrb[0].mxu0
        %v1154 = vadd.f32 %v1105, %v1153
        %v1155 = vpop.f32.mrb[0].mxu0
        %v1156 = vpop.f32.mrb[0].mxu0
        %v1157 = vadd.f32 %v1108, %v1156
        %v1158 = vpop.f32.mrb[0].mxu0
        %1159 = vdwg.mxu0
        %1160 = vmatprep.subr.bf16.mxu0 0
        %1161 = vmatpush1.bf16.msra.mxu0 %v950
        %1162 = vmatprep.subr.bf16.mxu0 0
        %1163 = vmatpush1.bf16.msra.mxu0 %v951
        %1164 = vmatprep.subr.bf16.mxu0 0
        %1165 = vmatpush1.bf16.msra.mxu0 %v952
        %1166 = vmatprep.subr.bf16.mxu0 0
        %1167 = vmatpush1.bf16.msra.mxu0 %v953
        %1168 = vmatprep.subr.bf16.mxu0 0
        %1169 = vmatpush1.bf16.msra.mxu0 %v954
        %1170 = vmatprep.subr.bf16.mxu0 0
        %1171 = vmatpush1.bf16.msra.mxu0 %v955
        %1172 = vmatprep.subr.bf16.mxu0 0
        %1173 = vmatpush1.bf16.msra.mxu0 %v956
        %1174 = vmatprep.subr.bf16.mxu0 0
        %1175 = vmatpush1.bf16.msra.mxu0 %v957
        %1176 = vmatprep.subr.bf16.mxu0 0
        %1177 = vmatpush1.bf16.msra.mxu0 %v958
        %1178 = vmatprep.subr.bf16.mxu0 0
        %1179 = vmatpush1.bf16.msra.mxu0 %v959
        %1180 = vmatprep.subr.bf16.mxu0 0
        %1181 = vmatpush1.bf16.msra.mxu0 %v960
        %1182 = vmatprep.subr.bf16.mxu0 0
        %1183 = vmatpush1.bf16.msra.mxu0 %v961
        %1184 = vmatprep.subr.bf16.mxu0 0
        %1185 = vmatpush1.bf16.msra.mxu0 %v962
        %1186 = vmatprep.subr.bf16.mxu0 0
        %1187 = vmatpush1.bf16.msra.mxu0 %v963
        %1188 = vmatprep.subr.bf16.mxu0 0
        %1189 = vmatpush1.bf16.msra.mxu0 %v964
        %1190 = vmatprep.subr.bf16.mxu0 0
        %1191 = vmatpush1.bf16.msra.mxu0 %v965
        %1192 = vmatprep.mubr.bf16.mxu0 %v469
        %1193 = vmatmul.mubr.bf16.gmra.mrb[0].mxu0 %v468
        %v1194 = vpop.f32.mrb[0].mxu0
        %v1195 = vadd.f32 %v1146, %v1194
        %v1196 = vpop.f32.mrb[0].mxu0
        %v1197 = vpop.f32.mrb[0].mxu0
        %v1198 = vadd.f32 %v1149, %v1197
        %v1199 = vpop.f32.mrb[0].mxu0
        %1200 = vmatprep.mubr.bf16.mxu0 %v475
        %1201 = vmatmul.mubr.bf16.gmra.mrb[0].mxu0 %v474
        %v1202 = vpop.f32.mrb[0].mxu0
        %v1203 = vadd.f32 %v1154, %v1202
        %v1204 = vpop.f32.mrb[0].mxu0
        %v1205 = vpop.f32.mrb[0].mxu0
        %v1206 = vadd.f32 %v1157, %v1205
        %v1207 = vpop.f32.mrb[0].mxu0
        %1208 = vdwg.mxu0
        %1209 = vmatprep.subr.bf16.mxu0 0
        %1210 = vmatpush1.bf16.msra.mxu0 %v966
        %1211 = vmatprep.subr.bf16.mxu0 0
        %1212 = vmatpush1.bf16.msra.mxu0 %v967
        %1213 = vmatprep.subr.bf16.mxu0 0
        %1214 = vmatpush1.bf16.msra.mxu0 %v968
        %1215 = vmatprep.subr.bf16.mxu0 0
        %1216 = vmatpush1.bf16.msra.mxu0 %v969
        %1217 = vmatprep.subr.bf16.mxu0 0
        %1218 = vmatpush1.bf16.msra.mxu0 %v970
        %1219 = vmatprep.subr.bf16.mxu0 0
        %1220 = vmatpush1.bf16.msra.mxu0 %v971
        %1221 = vmatprep.subr.bf16.mxu0 0
        %1222 = vmatpush1.bf16.msra.mxu0 %v972
        %1223 = vmatprep.subr.bf16.mxu0 0
        %1224 = vmatpush1.bf16.msra.mxu0 %v973
        %1225 = vmatprep.subr.bf16.mxu0 0
        %1226 = vmatpush1.bf16.msra.mxu0 %v974
        %1227 = vmatprep.subr.bf16.mxu0 0
        %1228 = vmatpush1.bf16.msra.mxu0 %v975
        %1229 = vmatprep.subr.bf16.mxu0 0
        %1230 = vmatpush1.bf16.msra.mxu0 %v976
        %1231 = vmatprep.subr.bf16.mxu0 0
        %1232 = vmatpush1.bf16.msra.mxu0 %v977
        %1233 = vmatprep.subr.bf16.mxu0 0
        %1234 = vmatpush1.bf16.msra.mxu0 %v978
        %1235 = vmatprep.subr.bf16.mxu0 0
        %1236 = vmatpush1.bf16.msra.mxu0 %v979
        %1237 = vmatprep.subr.bf16.mxu0 0
        %1238 = vmatpush1.bf16.msra.mxu0 %v980
        %1239 = vmatprep.subr.bf16.mxu0 0
        %1240 = vmatpush1.bf16.msra.mxu0 %v981
        %1241 = vmatprep.mubr.bf16.mxu0 %v471
        %1242 = vmatmul.mubr.bf16.gmra.mrb[0].mxu0 %v470
        %v1243 = vpop.f32.mrb[0].mxu0
        %v1244 = vadd.f32 %v1195, %v1243
        %v1245 = vpop.f32.mrb[0].mxu0
        %v1246 = vpop.f32.mrb[0].mxu0
        %v1247 = vadd.f32 %v1198, %v1246
        %v1248 = vpop.f32.mrb[0].mxu0
        %1249 = vmatprep.mubr.bf16.mxu0 %v477
        %1250 = vmatmul.mubr.bf16.gmra.mrb[0].mxu0 %v476
        %v1251 = vpop.f32.mrb[0].mxu0
        %v1252 = vadd.f32 %v1203, %v1251
        %v1253 = vpop.f32.mrb[0].mxu0
        %v1254 = vpop.f32.mrb[0].mxu0
        %v1255 = vadd.f32 %v1206, %v1254
        %v1256 = vpop.f32.mrb[0].mxu0
        %1257 = vdwg.mxu0
        %1258 = vmatprep.subr.bf16.mxu0 0
        %1259 = vmatpush1.bf16.msra.mxu0 %v982
        %1260 = vmatprep.subr.bf16.mxu0 0
        %1261 = vmatpush1.bf16.msra.mxu0 %v983
        %1262 = vmatprep.subr.bf16.mxu0 0
        %1263 = vmatpush1.bf16.msra.mxu0 %v984
        %1264 = vmatprep.subr.bf16.mxu0 0
        %1265 = vmatpush1.bf16.msra.mxu0 %v985
        %1266 = vmatprep.subr.bf16.mxu0 0
        %1267 = vmatpush1.bf16.msra.mxu0 %v986
        %1268 = vmatprep.subr.bf16.mxu0 0
        %1269 = vmatpush1.bf16.msra.mxu0 %v987
        %1270 = vmatprep.subr.bf16.mxu0 0
        %1271 = vmatpush1.bf16.msra.mxu0 %v988
        %1272 = vmatprep.subr.bf16.mxu0 0
        %1273 = vmatpush1.bf16.msra.mxu0 %v989
        %1274 = vmatprep.subr.bf16.mxu0 0
        %1275 = vmatpush1.bf16.msra.mxu0 0
        %1276 = vmatprep.subr.bf16.mxu0 0
        %1277 = vmatpush1.bf16.msra.mxu0 0
        %1278 = vmatprep.subr.bf16.mxu0 0
        %1279 = vmatpush1.bf16.msra.mxu0 0
        %1280 = vmatprep.subr.bf16.mxu0 0
        %1281 = vmatpush1.bf16.msra.mxu0 0
        %1282 = vmatprep.subr.bf16.mxu0 0
        %1283 = vmatpush1.bf16.msra.mxu0 0
        %1284 = vmatprep.subr.bf16.mxu0 0
        %1285 = vmatpush1.bf16.msra.mxu0 0
        %1286 = vmatprep.subr.bf16.mxu0 0
        %1287 = vmatpush1.bf16.msra.mxu0 0
        %1288 = vmatprep.subr.bf16.mxu0 0
        %1289 = vmatpush1.bf16.msra.mxu0 0
        %1290 = vmatprep.mubr.bf16.mxu0 0
        %1291 = vmatmul.mubr.bf16.gmra.mrb[0].mxu0 %v472
        %v1292 = vpop.f32.mrb[0].mxu0
        %v1293 = vadd.f32 %v1244, %v1292
        %v1294 = vpop.f32.mrb[0].mxu0
        %v1295 = vpop.f32.mrb[0].mxu0
        %v1296 = vadd.f32 %v1247, %v1295
        %v1297 = vpop.f32.mrb[0].mxu0
        %1298 = vmatprep.mubr.bf16.mxu0 0
        %1299 = vmatmul.mubr.bf16.gmra.mrb[0].mxu0 %v478
        %v1300 = vpop.f32.mrb[0].mxu0
        %v1301 = vadd.f32 %v1252, %v1300
        %v1302 = vpop.f32.mrb[0].mxu0
        %v1303 = vpop.f32.mrb[0].mxu0
        %v1304 = vadd.f32 %v1255, %v1303
        %v1305 = vpop.f32.mrb[0].mxu0
        %1306 = vdwg.mxu0
        %v1307 = vmax.f32 %v1293, 0.0
        %v1308 = vmax.f32 %v1296, 0.0
        %v1309 = vmax.f32 %v1301, 0.0
        %v1310 = vmax.f32 %v1304, 0.0
        %v1311 = vpack.c.bf16 %v1308, %v1307
        %v1312 = vpack.c.bf16 %v1310, %v1309
        %v1313 = vld [vmem:[%s3] sm:$0xf]
        %v1314 = vld [vmem:[%s3 + $0x4] sm:$0xf]
        %v1315 = vld [vmem:[%s3 + $0x8] sm:$0xf]
        %v1316 = vld [vmem:[%s3 + $0xc] sm:$0xf]
        %v1317 = vld [vmem:[%s4] sm:$0x1]
        %v1319 = vlaneseq
        %v1320 = vshrl.u32 %v1319, 7
        %v1321 = vsub.s32 0, %v1320
        %v1322 = vrot.slane %v1317, %v1321
        %v1328 = vunpack.c.l.b16 %v1313
        %v1329 = vunpack.c.l.b16 %v1314
        %v1330 = vunpack.c.l.b16 %v1315
        %v1331 = vunpack.c.l.b16 %v1316
        %v1332 = vpack.c.b16 %v1329, %v1328
        %v1333 = vpack.c.b16 %v1331, %v1330
        %vm1336 = vcmask 261120
        %v1338 = vsel %vm1336, %v1311, 0
        %v1341 = vsel %vm1336, %v1312, 0
        %1343 = vmatprep.subr.bf16.mxu0 0
        %1344 = vmatpush1.bf16.msra.mxu0 %v1332
        %1345 = vmatprep.subr.bf16.mxu0 0
        %1346 = vmatpush1.bf16.msra.mxu0 %v1333
        %1347 = vmatprep.subr.bf16.mxu0 0
        %1348 = vmatpush1.bf16.msra.mxu0 0
        %1349 = vmatprep.subr.bf16.mxu0 0
        %1350 = vmatpush1.bf16.msra.mxu0 0
        %1351 = vmatprep.subr.bf16.mxu0 0
        %1352 = vmatpush1.bf16.msra.mxu0 0
        %1353 = vmatprep.subr.bf16.mxu0 0
        %1354 = vmatpush1.bf16.msra.mxu0 0
        %1355 = vmatprep.subr.bf16.mxu0 0
        %1356 = vmatpush1.bf16.msra.mxu0 0
        %1357 = vmatprep.subr.bf16.mxu0 0
        %1358 = vmatpush1.bf16.msra.mxu0 0
        %1359 = vmatprep.subr.bf16.mxu0 0
        %1360 = vmatpush1.bf16.msra.mxu0 0
        %1361 = vmatprep.subr.bf16.mxu0 0
        %1362 = vmatpush1.bf16.msra.mxu0 0
        %1363 = vmatprep.subr.bf16.mxu0 0
        %1364 = vmatpush1.bf16.msra.mxu0 0
        %1365 = vmatprep.subr.bf16.mxu0 0
        %1366 = vmatpush1.bf16.msra.mxu0 0
        %1367 = vmatprep.subr.bf16.mxu0 0
        %1368 = vmatpush1.bf16.msra.mxu0 0
        %1369 = vmatprep.subr.bf16.mxu0 0
        %1370 = vmatpush1.bf16.msra.mxu0 0
        %1371 = vmatprep.subr.bf16.mxu0 0
        %1372 = vmatpush1.bf16.msra.mxu0 0
        %1373 = vmatprep.subr.bf16.mxu0 0
        %1374 = vmatpush1.bf16.msra.mxu0 0
        %1375 = vmatprep.mubr.bf16.mxu0 0
        %1376 = vmatmul.mubr.bf16.gmra.mrb[0].mxu0 %v1338
        %v1377 = vpop.f32.mrb[0].mxu0
        %v1378 = vadd.f32 %v1322, %v1377
        %v1379 = vpop.f32.mrb[0].mxu0
        %v1380 = vpop.f32.mrb[0].mxu0
        %v1381 = vadd.f32 %v1322, %v1380
        %v1382 = vpop.f32.mrb[0].mxu0
        %1383 = vmatprep.mubr.bf16.mxu0 0
        %1384 = vmatmul.mubr.bf16.gmra.mrb[0].mxu0 %v1341
        %v1385 = vpop.f32.mrb[0].mxu0
        %v1386 = vadd.f32 %v1322, %v1385
        %v1387 = vpop.f32.mrb[0].mxu0
        %v1388 = vpop.f32.mrb[0].mxu0
        %v1389 = vadd.f32 %v1322, %v1388
        %v1390 = vpop.f32.mrb[0].mxu0
        %1391 = vdwg.mxu0
        %1392 = vst [vmem:[%s241] sm:$0xff] %v1378
        %1393 = vst [vmem:[%s241 + $0x8] sm:$0xff] %v1381
        %1394 = vst [vmem:[%s241 + $0x10] sm:$0xff] %v1386
        %1395 = vst [vmem:[%s241 + $0x18] sm:$0xff] %v1389
        %s1396 = sand.u32 %s153, 1
        %s1397 = scalar_lea.sflag [#allocation3], %s1396
        %s1398 = sand.u32 %s153, 1
        %s1399 = smul.addr %s1398, 32
        %s1400 = scalar_lea.vmem [#allocation2], %s1399
        // Predicated region
        $region41: #{tpu_custom_call.1} parent=39 // pred_check
          %p1401 = pneg %p163
        $region42: #{tpu_custom_call.1} parent=39 // pred_check_branch
          %1403 = sbr.rel (%p1401) target = $region44
        $region43: #{tpu_custom_call.1} parent=39 // pred_region
          %s1405 = ssub.s32 512, 512
          %1406 = vsyncadd %s1397, %s1405
          %s1407 = smul.addr %s24, 4
          %s1408 = smul.addr %s23, 8
          %s1409 = sadd.s32 %s1407, %s1408
          %s1410 = smul.addr %s1409, 128
          %s1411 = scalar_lea.hbm %s5, %s1410
          %s1412 = sshll.u32 %s1400, 4
          %s1413 = int_to_ptr.vmem [resolvable:$true] %s1412
          %1418 = dma.vmem_to_hbm [thread:$0]  %s1413, 512, %s1411, %s1397, 128, 128, 8
        $region44: #{tpu_custom_call.1} parent=39 // pred_fallthru
          _
      $region40: #{tpu_custom_call.1} parent=5 // pred_fallthru
        _
      %p1419 = scmp.le.s32.totalorder 2, %s14
      // Predicated region
      $region45: #{tpu_custom_call.1} parent=5 // pred_check
        %p1420 = pneg %p1419
      $region46: #{tpu_custom_call.1} parent=5 // pred_check_branch
        %1422 = sbr.rel (%p1420) target = $region48
      $region47: #{tpu_custom_call.1} parent=5 // pred_region
        %s1423 = ssub.s32 %s14, 2
        // Predicated region
        $region49: #{tpu_custom_call.1} parent=47 // pred_check
          %p1424 = pneg %p169
        $region50: #{tpu_custom_call.1} parent=47 // pred_check_branch
          %1426 = sbr.rel (%p1424) target = $region52
        $region51: #{tpu_custom_call.1} parent=47 // pred_region
          %s1427 = sand.u32 %s154, 1
          %s1428 = scalar_lea.sflag [#allocation3], %s1427
          %s1429 = sand.u32 %s154, 1
          %s1430 = smul.addr %s1429, 32
          %s1431 = scalar_lea.vmem [#allocation2], %s1430
          %1432 = dma.done %s1428, 512
        $region52: #{tpu_custom_call.1} parent=47 // pred_fallthru
          _
      $region48: #{tpu_custom_call.1} parent=5 // pred_fallthru
        _
    $region6: #{tpu_custom_call.1} parent=1 // loop_footer
      %s18 = sadd.s32 1, %s14
    $region7: #{tpu_custom_call.1} parent=1 // loop_footer_branch
      %13 = sbr.rel target = $region3
    $region8: #{tpu_custom_call.1} parent=1 // loop_exit
      _
    %1433 = vsyncpa [#allocation3], 1
    %s1434 = scalar_lea.sflag [#allocation3], 1
    %1435 = vsyncpa %s1434, 1

// kernel: tpu_custom_call.1
$region0: #{tpu_custom_call.1}
  #allocation0 [shape = 'u32[]', space=smem, size = 0x4, offset = 0x4, fixed_abs, tag = 'smem constant byte address 0x4 - core index']
  #allocation1 [shape = 'u32[144,128]{1,0:T(1,128)}', space=vmem, size = 0x12000, scoped, tag = 'internal scratch']
  %s0 = inlined_call_operand.vmem [shape: bf16[2,2,50,128], index: 0, kind: input, shape index: {}]
  %s1 = inlined_call_operand.vmem [shape: bf16[1152,32], index: 1, kind: input, shape index: {}]
  %s2 = inlined_call_operand.vmem [shape: f32[1,32], index: 2, kind: input, shape index: {}]
  %s3 = inlined_call_operand.vmem [shape: bf16[32,128], index: 3, kind: input, shape index: {}]
  %s4 = inlined_call_operand.vmem [shape: f32[1,128], index: 4, kind: input, shape index: {}]
  %s5 = inlined_call_operand.hbm [shape: f32[2,2,32,128], index: 5, kind: output, shape index: {}]
  %s6 = sld [smem:[#allocation0]]
  $region53: #{tpu_custom_call.1} parent=0
    _
  %s8 = ssub.s32 1, %s6
  %s9 = scalar_select 0, %s8, %s6
  $region1: #{tpu_custom_call.1} parent=0
    #allocation2 [shape = 'u8[32768]{0}', space=vmem, size = 0x8000, scoped, tag = 'output window, operand 0']
    #allocation3 [shape = 's32[2]{0}', space=sflag, size = 0x8, scoped, tag = 'scoped memory for tpu_custom_call.1']
    %10 = vsyncpa [#allocation3], 0
    %s11 = scalar_lea.sflag [#allocation3], 1
    %12 = vsyncpa %s11, 0
    loop: start=0, step=1, limit=6
    $region2: #{tpu_custom_call.1} parent=1 // loop_pre_header
      _
    $region3: #{tpu_custom_call.1} parent=1 // loop_header
      %s14 = sphi 0, %s18
      %p15 = scmp.ge.s32.totalorder %s14, 6
      %s21 = sphi 0, %s33
      %s22 = sphi 0, %s29
      %s23 = sphi 0, %s21
      %s24 = sphi 0, %s22
      %s25 = sphi 0, %s23
      %s26 = sphi 0, %s24
      %s38 = sphi 0, %s40
      %s41 = sphi 0, %s38
      %s42 = sphi 0, %s41
      %s58 = sphi 0, %s42
      %s62 = sphi 0, %s62
      %s64 = sphi 0, %s62
      %s65 = sphi 0, %s64
      %s79 = sphi 0, %s65
      %s83 = sphi 0, %s83
      %s85 = sphi 0, %s83
      %s86 = sphi 0, %s85
      %s100 = sphi 0, %s86
      %s104 = sphi 0, %s104
      %s106 = sphi 0, %s104
      %s107 = sphi 0, %s106
      %s121 = sphi 0, %s107
      %s125 = sphi 0, %s125
      %s127 = sphi 0, %s125
      %s128 = sphi 0, %s127
      %s142 = sphi 0, %s128
      %s150 = sphi 0, %s152
      %s153 = sphi 0, %s150
      %s154 = sphi 0, %s153
      %s170 = sphi 0, %s154
    $region4: #{tpu_custom_call.1} parent=1 // loop_header_branch
      %17 = sbr.rel (%p15) target = $region8
    $region5: #{tpu_custom_call.1} parent=1 // loop_body
      %s19 = ssub.s32 %s14, 1
      %s20 = ssub.s32 %s14, 2
      %s27 = sadd.s32 1, %s22
      %p28 = scmp.ge.s32.totalorder %s27, 2
      %s29 = scalar_select %p28, 0, %s27
      %s30 = sadd.s32 1, %s21
      %s31 = scalar_select %p28, %s30, %s21
      %p32 = scmp.ge.s32.totalorder %s31, 2
      %s33 = scalar_select %p32, 0, %s31
      %s34 = ssub.s32 %s21, %s33
      %s35 = ssub.s32 %s22, %s29
      %s36 = sor.u32 %s34, %s35
      %p37 = scmp.eq.s32.totalorder %s36, 0
      %s39 = sadd.s32 %s38, 1
      %s40 = scalar_select %p37, %s38, %s39
      %p43 = pneg %p37
      %p44 = scmp.eq.s32.totalorder %s14, 3
      %p45 = por %p43, %p44
      %p46 = scmp.ne.s32.totalorder %s38, %s41
      %p47 = scmp.eq.s32.totalorder %s14, 0
      %p48 = por %p46, %p47
      %p49 = scmp.ne.s32.totalorder %s38, %s41
      %p50 = scmp.eq.s32.totalorder %s19, 3
      %p51 = por %p49, %p50
      %p52 = scmp.ne.s32.totalorder %s41, %s42
      %p53 = scmp.eq.s32.totalorder %s19, 0
      %p54 = por %p52, %p53
      %p55 = scmp.ne.s32.totalorder %s41, %s42
      %p56 = scmp.eq.s32.totalorder %s20, 3
      %p57 = por %p55, %p56
      %p59 = scmp.ne.s32.totalorder %s42, %s58
      %p60 = scmp.eq.s32.totalorder %s20, 0
      %p61 = por %p59, %p60
      %s63 = sadd.s32 %s62, 1
      %p66 = scmp.eq.s32.totalorder %s14, 3
      %p67 = scmp.ne.s32.totalorder %s62, %s64
      %p68 = scmp.eq.s32.totalorder %s14, 0
      %p69 = por %p67, %p68
      %p70 = scmp.ne.s32.totalorder %s62, %s64
      %p71 = scmp.eq.s32.totalorder %s19, 3
      %p72 = por %p70, %p71
      %p73 = scmp.ne.s32.totalorder %s64, %s65
      %p74 = scmp.eq.s32.totalorder %s19, 0
      %p75 = por %p73, %p74
      %p76 = scmp.ne.s32.totalorder %s64, %s65
      %p77 = scmp.eq.s32.totalorder %s20, 3
      %p78 = por %p76, %p77
      %p80 = scmp.ne.s32.totalorder %s65, %s79
      %p81 = scmp.eq.s32.totalorder %s20, 0
      %p82 = por %p80, %p81
      %s84 = sadd.s32 %s83, 1
      %p87 = scmp.eq.s32.totalorder %s14, 3
      %p88 = scmp.ne.s32.totalorder %s83, %s85
      %p89 = scmp.eq.s32.totalorder %s14, 0
      %p90 = por %p88, %p89
      %p91 = scmp.ne.s32.totalorder %s83, %s85
      %p92 = scmp.eq.s32.totalorder %s19, 3
      %p93 = por %p91, %p92
      %p94 = scmp.ne.s32.totalorder %s85, %s86
      %p95 = scmp.eq.s32.totalorder %s19, 0
      %p96 = por %p94, %p95
      %p97 = scmp.ne.s32.totalorder %s85, %s86
      %p98 = scmp.eq.s32.totalorder %s20, 3
      %p99 = por %p97, %p98
      %p101 = scmp.ne.s32.totalorder %s86, %s100
      %p102 = scmp.eq.s32.totalorder %s20, 0
      %p103 = por %p101, %p102
      %s105 = sadd.s32 %s104, 1
      %p108 = scmp.eq.s32.totalorder %s14, 3
      %p109 = scmp.ne.s32.totalorder %s104, %s106
      %p110 = scmp.eq.s32.totalorder %s14, 0
      %p111 = por %p109, %p110
      %p112 = scmp.ne.s32.totalorder %s104, %s106
      %p113 = scmp.eq.s32.totalorder %s19, 3
      %p114 = por %p112, %p113
      %p115 = scmp.ne.s32.totalorder %s106, %s107
      %p116 = scmp.eq.s32.totalorder %s19, 0
      %p117 = por %p115, %p116
      %p118 = scmp.ne.s32.totalorder %s106, %s107
      %p119 = scmp.eq.s32.totalorder %s20, 3
      %p120 = por %p118, %p119
      %p122 = scmp.ne.s32.totalorder %s107, %s121
      %p123 = scmp.eq.s32.totalorder %s20, 0
      %p124 = por %p122, %p123
      %s126 = sadd.s32 %s125, 1
      %p129 = scmp.eq.s32.totalorder %s14, 3
      %p130 = scmp.ne.s32.totalorder %s125, %s127
      %p131 = scmp.eq.s32.totalorder %s14, 0
      %p132 = por %p130, %p131
      %p133 = scmp.ne.s32.totalorder %s125, %s127
      %p134 = scmp.eq.s32.totalorder %s19, 3
      %p135 = por %p133, %p134
      %p136 = scmp.ne.s32.totalorder %s127, %s128
      %p137 = scmp.eq.s32.totalorder %s19, 0
      %p138 = por %p136, %p137
      %p139 = scmp.ne.s32.totalorder %s127, %s128
      %p140 = scmp.eq.s32.totalorder %s20, 3
      %p141 = por %p139, %p140
      %p143 = scmp.ne.s32.totalorder %s128, %s142
      %p144 = scmp.eq.s32.totalorder %s20, 0
      %p145 = por %p143, %p144
      %s146 = ssub.s32 %s21, %s33
      %s147 = ssub.s32 %s22, %s29
      %s148 = sor.u32 %s146, %s147
      %p149 = scmp.eq.s32.totalorder %s148, 0
      %s151 = sadd.s32 %s150, 1
      %s152 = scalar_select %p149, %s150, %s151
      %p155 = pneg %p149
      %p156 = scmp.eq.s32.totalorder %s14, 3
      %p157 = por %p155, %p156
      %p158 = scmp.ne.s32.totalorder %s150, %s153
      %p159 = scmp.eq.s32.totalorder %s14, 0
      %p160 = por %p158, %p159
      %p161 = scmp.ne.s32.totalorder %s150, %s153
      %p162 = scmp.eq.s32.totalorder %s19, 3
      %p163 = por %p161, %p162
      %p164 = scmp.ne.s32.totalorder %s153, %s154
      %p165 = scmp.eq.s32.totalorder %s19, 0
      %p166 = por %p164, %p165
      %p167 = scmp.ne.s32.totalorder %s153, %s154
      %p168 = scmp.eq.s32.totalorder %s20, 3
      %p169 = por %p167, %p168
      %p171 = scmp.ne.s32.totalorder %s154, %s170
      %p172 = scmp.eq.s32.totalorder %s20, 0
      %p173 = por %p171, %p172
      %p174 = scmp.le.s32.totalorder 1, %s14
      %p175 = scmp.lt.s32.totalorder %s14, 5
      %p176 = pnand %p174, %p175
      %p177 = pneg %p176
      // Predicated region
      $region9: #{tpu_custom_call.1} parent=5 // pred_check
        _
      $region10: #{tpu_custom_call.1} parent=5 // pred_check_branch
        %179 = sbr.rel (%p176) target = $region12
      $region11: #{tpu_custom_call.1} parent=5 // pred_region
        %s180 = ssub.s32 %s14, 1
        // Predicated region
        $region13: #{tpu_custom_call.1} parent=11 // pred_check
          %p181 = pneg %p75
        $region14: #{tpu_custom_call.1} parent=11 // pred_check_branch
          %183 = sbr.rel (%p181) target = $region16
        $region15: #{tpu_custom_call.1} parent=11 // pred_region
          _
        $region16: #{tpu_custom_call.1} parent=11 // pred_fallthru
          _
        // Predicated region
        $region17: #{tpu_custom_call.1} parent=11 // pred_check
          %p184 = pneg %p96
        $region18: #{tpu_custom_call.1} parent=11 // pred_check_branch
          %186 = sbr.rel (%p184) target = $region20
        $region19: #{tpu_custom_call.1} parent=11 // pred_region
          _
        $region20: #{tpu_custom_call.1} parent=11 // pred_fallthru
          _
        // Predicated region
        $region21: #{tpu_custom_call.1} parent=11 // pred_check
          %p187 = pneg %p117
        $region22: #{tpu_custom_call.1} parent=11 // pred_check_branch
          %189 = sbr.rel (%p187) target = $region24
        $region23: #{tpu_custom_call.1} parent=11 // pred_region
          _
        $region24: #{tpu_custom_call.1} parent=11 // pred_fallthru
          _
        // Predicated region
        $region25: #{tpu_custom_call.1} parent=11 // pred_check
          %p190 = pneg %p138
        $region26: #{tpu_custom_call.1} parent=11 // pred_check_branch
          %192 = sbr.rel (%p190) target = $region28
        $region27: #{tpu_custom_call.1} parent=11 // pred_region
          _
        $region28: #{tpu_custom_call.1} parent=11 // pred_fallthru
          _
      $region12: #{tpu_custom_call.1} parent=5 // pred_fallthru
        _
      %p193 = scmp.lt.s32.totalorder %s14, 4
      // Predicated region
      $region29: #{tpu_custom_call.1} parent=5 // pred_check
        %p194 = pneg %p193
      $region30: #{tpu_custom_call.1} parent=5 // pred_check_branch
        %196 = sbr.rel (%p194) target = $region32
      $region31: #{tpu_custom_call.1} parent=5 // pred_region
        // Predicated region
        $region33: #{tpu_custom_call.1} parent=31 // pred_check
          %p197 = pneg %p48
        $region34: #{tpu_custom_call.1} parent=31 // pred_check_branch
          %199 = sbr.rel (%p197) target = $region36
        $region35: #{tpu_custom_call.1} parent=31 // pred_region
          %p200 = scmp.lt.s32.totalorder %s21, 1
          %s201 = scalar_select %p200, %s21, 1
          %p202 = scmp.lt.s32.totalorder %s22, 1
          %s203 = scalar_select %p202, %s22, 1
          %s204 = smul.addr %s203, 7
          %s205 = smul.addr %s201, 14
          %s206 = sadd.s32 %s204, %s205
          %s207 = smul.addr %s206, 4
          %s208 = scalar_lea.vmem %s0, %s207
        $region36: #{tpu_custom_call.1} parent=31 // pred_fallthru
          _
      $region32: #{tpu_custom_call.1} parent=5 // pred_fallthru
        _
      %p209 = scmp.le.s32.totalorder 1, %s14
      %p210 = scmp.lt.s32.totalorder %s14, 5
      %p211 = pnand %p209, %p210
      %p212 = pneg %p211
      // Predicated region
      $region37: #{tpu_custom_call.1} parent=5 // pred_check
        _
      $region38: #{tpu_custom_call.1} parent=5 // pred_check_branch
        %214 = sbr.rel (%p211) target = $region40
      $region39: #{tpu_custom_call.1} parent=5 // pred_region
        %s215 = ssub.s32 %s14, 1
        %p216 = scmp.lt.s32.totalorder %s23, 1
        %s217 = scalar_select %p216, %s23, 1
        %p218 = scmp.lt.s32.totalorder %s24, 1
        %s219 = scalar_select %p218, %s24, 1
        %s220 = smul.addr %s219, 7
        %s221 = smul.addr %s217, 14
        %s222 = sadd.s32 %s220, %s221
        %s223 = smul.addr %s222, 4
        %s224 = scalar_lea.vmem %s0, %s223
        %p225 = pneg %p54
        %p226 = pneg %p51
        %p227 = pneg %p75
        %p228 = pneg %p72
        %p229 = pneg %p96
        %p230 = pneg %p93
        %p231 = pneg %p117
        %p232 = pneg %p114
        %p233 = pneg %p138
        %p234 = pneg %p135
        %p235 = pneg %p166
        %p236 = pneg %p163
        %s237 = sand.u32 %s153, 1
        %s238 = scalar_lea.sflag [#allocation3], %s237
        %s239 = sand.u32 %s153, 1
        %s240 = smul.addr %s239, 32
        %s241 = scalar_lea.vmem [#allocation2], %s240
        %p242 = scmp.lt.s32.totalorder %s23, 1
        %s243 = scalar_select %p242, %s23, 1
        %p244 = scmp.lt.s32.totalorder %s24, 1
        %s245 = scalar_select %p244, %s24, 1
        %s246 = smul.addr %s245, 7
        %s247 = smul.addr %s243, 14
        %s248 = sadd.s32 %s246, %s247
        %s249 = smul.addr %s248, 4
        %s250 = scalar_lea.vmem %s0, %s249
        %v252 = vld [vmem:[%s250] sm:$0xf]
        %v253 = vld [vmem:[%s250 + $0x4] sm:$0xf]
        %v254 = vld [vmem:[%s250 + $0x8] sm:$0xf]
        %v255 = vld [vmem:[%s250 + $0xc] sm:$0xf]
        %v256 = vld [vmem:[%s250 + $0x10] sm:$0xf]
        %v257 = vld [vmem:[%s250 + $0x14] sm:$0xf]
        %v258 = vld [vmem:[%s250 + $0x18] sm:$0x1]
        %v259 = vunpack.c.l.bf16 %v252
        %v260 = vunpack.c.l.bf16 %v253
        %v261 = vunpack.c.l.bf16 %v254
        %v262 = vunpack.c.l.bf16 %v255
        %v263 = vunpack.c.l.bf16 %v256
        %v264 = vunpack.c.l.bf16 %v257
        %v265 = vunpack.c.l.bf16 %v258
        %v266 = vlaneseq
        %v267 = vshrl.u32 %v266, 7
        %v268 = vadd.s32 %v267, 8
        %v269 = vadd.s32 %v267, 16
        %v270 = vadd.s32 %v267, 24
        %v271 = vadd.s32 %v267, 32
        %v272 = vadd.s32 %v267, 40
        %v273 = vadd.s32 %v267, 48
        %vm274 = vcmp.lt.s32.totalorder %v267, 0
        %v275 = vsub.s32 0, %v267
        %v276 = vsel %vm274, %v275, %v267
        %v277 = vshrl.u32 %v276, 3
        %v278 = vand.u32 %v276, 7
        %v279 = vsub.s32 0, %v278
        %v280 = vsel %vm274, %v279, %v278
        %vm281 = vcmp.lt.s32.totalorder %v268, 0
        %v282 = vsub.s32 0, %v268
        %v283 = vsel %vm281, %v282, %v268
        %v284 = vshrl.u32 %v283, 3
        %v285 = vand.u32 %v283, 7
        %v286 = vsub.s32 0, %v285
        %v287 = vsel %vm281, %v286, %v285
        %vm288 = vcmp.lt.s32.totalorder %v269, 0
        %v289 = vsub.s32 0, %v269
        %v290 = vsel %vm288, %v289, %v269
        %v291 = vshrl.u32 %v290, 3
        %v292 = vand.u32 %v290, 7
        %v293 = vsub.s32 0, %v292
        %v294 = vsel %vm288, %v293, %v292
        %vm295 = vcmp.lt.s32.totalorder %v270, 0
        %v296 = vsub.s32 0, %v270
        %v297 = vsel %vm295, %v296, %v270
        %v298 = vshrl.u32 %v297, 3
        %v299 = vand.u32 %v297, 7
        %v300 = vsub.s32 0, %v299
        %v301 = vsel %vm295, %v300, %v299
        %vm302 = vcmp.lt.s32.totalorder %v271, 0
        %v303 = vsub.s32 0, %v271
        %v304 = vsel %vm302, %v303, %v271
        %v305 = vshrl.u32 %v304, 3
        %v306 = vand.u32 %v304, 7
        %v307 = vsub.s32 0, %v306
        %v308 = vsel %vm302, %v307, %v306
        %vm309 = vcmp.lt.s32.totalorder %v272, 0
        %v310 = vsub.s32 0, %v272
        %v311 = vsel %vm309, %v310, %v272
        %v312 = vshrl.u32 %v311, 3
        %v313 = vand.u32 %v311, 7
        %v314 = vsub.s32 0, %v313
        %v315 = vsel %vm309, %v314, %v313
        %vm316 = vcmp.lt.s32.totalorder %v273, 0
        %v317 = vsub.s32 0, %v273
        %v318 = vsel %vm316, %v317, %v273
        %v319 = vshrl.u32 %v318, 3
        %v320 = vand.u32 %v318, 7
        %v321 = vsub.s32 0, %v320
        %v322 = vsel %vm316, %v321, %v320
        %vm323 = vcmp.ne.s32.totalorder %v280, 0
        %vm324 = vcmp.ne.s32.totalorder %v287, 0
        %vm325 = vcmp.ne.s32.totalorder %v294, 0
        %vm326 = vcmp.ne.s32.totalorder %v301, 0
        %vm327 = vcmp.ne.s32.totalorder %v308, 0
        %vm328 = vcmp.ne.s32.totalorder %v315, 0
        %vm329 = vcmp.ne.s32.totalorder %v322, 0
        %vm330 = vcmp.lt.s32.totalorder %v280, 0
        %vm331 = vcmp.lt.s32.totalorder %v287, 0
        %vm332 = vcmp.lt.s32.totalorder %v294, 0
        %vm333 = vcmp.lt.s32.totalorder %v301, 0
        %vm334 = vcmp.lt.s32.totalorder %v308, 0
        %vm335 = vcmp.lt.s32.totalorder %v315, 0
        %vm336 = vcmp.lt.s32.totalorder %v322, 0
        %vm337 = vmand %vm330, %vm323
        %vm338 = vmand %vm331, %vm324
        %vm339 = vmand %vm332, %vm325
        %vm340 = vmand %vm333, %vm326
        %vm341 = vmand %vm334, %vm327
        %vm342 = vmand %vm335, %vm328
        %vm343 = vmand %vm336, %vm329
        %v344 = vadd.s32 %v280, 8
        %v345 = vadd.s32 %v287, 8
        %v346 = vadd.s32 %v294, 8
        %v347 = vadd.s32 %v301, 8
        %v348 = vadd.s32 %v308, 8
        %v349 = vadd.s32 %v315, 8
        %v350 = vadd.s32 %v322, 8
        %v351 = vsel %vm337, %v344, %v280
        %v352 = vsel %vm338, %v345, %v287
        %v353 = vsel %vm339, %v346, %v294
        %v354 = vsel %vm340, %v347, %v301
        %v355 = vsel %vm341, %v348, %v308
        %v356 = vsel %vm342, %v349, %v315
        %v357 = vsel %vm343, %v350, %v322
        %vm358 = vcmp.eq.s32.totalorder %v351, 0
        %vm359 = vcmp.eq.s32.totalorder %v352, 0
        %vm360 = vcmp.eq.s32.totalorder %v353, 0
        %vm361 = vcmp.eq.s32.totalorder %v354, 0
        %vm362 = vcmp.eq.s32.totalorder %v355, 0
        %vm363 = vcmp.eq.s32.totalorder %v356, 0
        %v364 = vsel %vm358, 1, 0
        %v365 = vsel %vm359, 1, 0
        %v366 = vsel %vm360, 1, 0
        %v367 = vsel %vm361, 1, 0
        %v368 = vsel %vm362, 1, 0
        %v369 = vsel %vm363, 1, 0
        %vm370 = vcmp.eq.s32.totalorder %v364, 1
        %vm371 = vcmp.eq.s32.totalorder %v365, 1
        %vm372 = vcmp.eq.s32.totalorder %v366, 1
        %vm373 = vcmp.eq.s32.totalorder %v367, 1
        %vm374 = vcmp.eq.s32.totalorder %v368, 1
        %vm375 = vcmp.eq.s32.totalorder %v369, 1
        %v376 = vsel %vm370, 0.0, %v259
        %v377 = vsel %vm371, 0.0, %v260
        %v378 = vsel %vm372, 0.0, %v261
        %v379 = vsel %vm373, 0.0, %v262
        %v380 = vsel %vm374, 0.0, %v263
        %v381 = vsel %vm375, 0.0, %v264
        %vm382 = vcmp.eq.s32.totalorder %v351, 1
        %vm383 = vcmp.eq.s32.totalorder %v352, 1
        %vm384 = vcmp.eq.s32.totalorder %v353, 1
        %vm385 = vcmp.eq.s32.totalorder %v354, 1
        %vm386 = vcmp.eq.s32.totalorder %v355, 1
        %vm387 = vcmp.eq.s32.totalorder %v356, 1
        %vm388 = vcmp.eq.s32.totalorder %v357, 1
        %v389 = vsel %vm382, 1, 0
        %v390 = vsel %vm383, 1, 0
        %v391 = vsel %vm384, 1, 0
        %v392 = vsel %vm385, 1, 0
        %v393 = vsel %vm386, 1, 0
        %v394 = vsel %vm387, 1, 0
        %v395 = vsel %vm388, 1, 0
        %vm396 = vcmp.eq.s32.totalorder %v389, 1
        %vm397 = vcmp.eq.s32.totalorder %v390, 1
        %vm398 = vcmp.eq.s32.totalorder %v391, 1
        %vm399 = vcmp.eq.s32.totalorder %v392, 1
        %vm400 = vcmp.eq.s32.totalorder %v393, 1
        %vm401 = vcmp.eq.s32.totalorder %v394, 1
        %vm402 = vcmp.eq.s32.totalorder %v395, 1
        %v403 = vsel %vm396, 0.0, %v259
        %v404 = vsel %vm397, 0.0, %v260
        %v405 = vsel %vm398, 0.0, %v261
        %v406 = vsel %vm399, 0.0, %v262
        %v407 = vsel %vm400, 0.0, %v263
        %v408 = vsel %vm401, 0.0, %v264
        %v409 = vsel %vm402, 0.0, %v265
        %vm415 = vcmask 1046528
        %v416 = vrot.slane %v259, 1
        %v417 = vrot.slane %v260, 1
        %v418 = vsel %vm415, %v416, %v417
        %v419 = vrot.slane %v261, 1
        %v420 = vsel %vm415, %v417, %v419
        %v421 = vrot.slane %v262, 1
        %v422 = vsel %vm415, %v419, %v421
        %v423 = vrot.slane %v263, 1
        %v424 = vsel %vm415, %v421, %v423
        %vm434 = vcmask 1045504
        %v435 = vrot.slane %v403, 2
        %v436 = vrot.slane %v404, 2
        %v437 = vsel %vm434, %v435, %v436
        %v438 = vrot.slane %v405, 2
        %v439 = vsel %vm434, %v436, %v438
        %v440 = vrot.slane %v406, 2
        %v441 = vsel %vm434, %v438, %v440
        %v442 = vrot.slane %v407, 2
        %v443 = vsel %vm434, %v440, %v442
        %v449 = vrot.slane %v264, 1
        %v450 = vsel %vm415, %v423, %v449
        %v453 = vrot.slane %v408, 2
        %v454 = vsel %vm434, %v442, %v453
        %v457 = vrot.slane %v265, 1
        %v458 = vsel %vm415, %v449, %v457
        %v461 = vrot.slane %v409, 2
        %v462 = vsel %vm434, %v453, %v461
        %v464 = vpack.c.bf16 %v377, %v376
        %v465 = vpack.c.bf16 %v420, %v418
        %v466 = vpack.c.bf16 %v439, %v437
        %v467 = vpack.c.bf16 %v378, %v377
        %v468 = vpack.c.bf16 %v422, %v420
        %v469 = vpack.c.bf16 %v441, %v439
        %v470 = vpack.c.bf16 %v379, %v378
        %v471 = vpack.c.bf16 %v424, %v422
        %v472 = vpack.c.bf16 %v443, %v441
        %v473 = vpack.c.bf16 %v380, %v379
        %v474 = vpack.c.bf16 %v450, %v424
        %v475 = vpack.c.bf16 %v454, %v443
        %v476 = vpack.c.bf16 %v381, %v380
        %v477 = vpack.c.bf16 %v458, %v450
        %v478 = vpack.c.bf16 %v462, %v454
        %v479 = vld [vmem:[%s1] sm:$0xf]
        %v480 = vld [vmem:[%s1 + $0x4] sm:$0xf]
        %v481 = vld [vmem:[%s1 + $0x8] sm:$0xf]
        %v482 = vld [vmem:[%s1 + $0xc] sm:$0xf]
        %v483 = vld [vmem:[%s1 + $0x10] sm:$0xf]
        %v484 = vld [vmem:[%s1 + $0x14] sm:$0xf]
        %v485 = vld [vmem:[%s1 + $0x18] sm:$0xf]
        %v486 = vld [vmem:[%s1 + $0x1c] sm:$0xf]
        %v487 = vld [vmem:[%s1 + $0x20] sm:$0xf]
        %v488 = vld [vmem:[%s1 + $0x24] sm:$0xf]
        %v489 = vld [vmem:[%s1 + $0x28] sm:$0xf]
        %v490 = vld [vmem:[%s1 + $0x2c] sm:$0xf]
        %v491 = vld [vmem:[%s1 + $0x30] sm:$0xf]
        %v492 = vld [vmem:[%s1 + $0x34] sm:$0xf]
        %v493 = vld [vmem:[%s1 + $0x38] sm:$0xf]
        %v494 = vld [vmem:[%s1 + $0x3c] sm:$0xf]
        %v495 = vld [vmem:[%s1 + $0x40] sm:$0xf]
        %v496 = vld [vmem:[%s1 + $0x44] sm:$0xf]
        %v497 = vld [vmem:[%s1 + $0x48] sm:$0xf]
        %v498 = vld [vmem:[%s1 + $0x4c] sm:$0xf]
        %v499 = vld [vmem:[%s1 + $0x50] sm:$0xf]
        %v500 = vld [vmem:[%s1 + $0x54] sm:$0xf]
        %v501 = vld [vmem:[%s1 + $0x58] sm:$0xf]
        %v502 = vld [vmem:[%s1 + $0x5c] sm:$0xf]
        %v503 = vld [vmem:[%s1 + $0x60] sm:$0xf]
        %v504 = vld [vmem:[%s1 + $0x64] sm:$0xf]
        %v505 = vld [vmem:[%s1 + $0x68] sm:$0xf]
        %v506 = vld [vmem:[%s1 + $0x6c] sm:$0xf]
        %v507 = vld [vmem:[%s1 + $0x70] sm:$0xf]
        %v508 = vld [vmem:[%s1 + $0x74] sm:$0xf]
        %v509 = vld [vmem:[%s1 + $0x78] sm:$0xf]
        %v510 = vld [vmem:[%s1 + $0x7c] sm:$0xf]
        %v511 = vld [vmem:[%s1 + $0x80] sm:$0xf]
        %v512 = vld [vmem:[%s1 + $0x84] sm:$0xf]
        %v513 = vld [vmem:[%s1 + $0x88] sm:$0xf]
        %v514 = vld [vmem:[%s1 + $0x8c] sm:$0xf]
        %v515 = vld [vmem:[%s1 + $0x90] sm:$0xf]
        %v516 = vld [vmem:[%s1 + $0x94] sm:$0xf]
        %v517 = vld [vmem:[%s1 + $0x98] sm:$0xf]
        %v518 = vld [vmem:[%s1 + $0x9c] sm:$0xf]
        %v519 = vld [vmem:[%s1 + $0xa0] sm:$0xf]
        %v520 = vld [vmem:[%s1 + $0xa4] sm:$0xf]
        %v521 = vld [vmem:[%s1 + $0xa8] sm:$0xf]
        %v522 = vld [vmem:[%s1 + $0xac] sm:$0xf]
        %v523 = vld [vmem:[%s1 + $0xb0] sm:$0xf]
        %v524 = vld [vmem:[%s1 + $0xb4] sm:$0xf]
        %v525 = vld [vmem:[%s1 + $0xb8] sm:$0xf]
        %v526 = vld [vmem:[%s1 + $0xbc] sm:$0xf]
        %v527 = vld [vmem:[%s1 + $0xc0] sm:$0xf]
        %v528 = vld [vmem:[%s1 + $0xc4] sm:$0xf]
        %v529 = vld [vmem:[%s1 + $0xc8] sm:$0xf]
        %v530 = vld [vmem:[%s1 + $0xcc] sm:$0xf]
        %v531 = vld [vmem:[%s1 + $0xd0] sm:$0xf]
        %v532 = vld [vmem:[%s1 + $0xd4] sm:$0xf]
        %v533 = vld [vmem:[%s1 + $0xd8] sm:$0xf]
        %v534 = vld [vmem:[%s1 + $0xdc] sm:$0xf]
        %v535 = vld [vmem:[%s1 + $0xe0] sm:$0xf]
        %v536 = vld [vmem:[%s1 + $0xe4] sm:$0xf]
        %v537 = vld [vmem:[%s1 + $0xe8] sm:$0xf]
        %v538 = vld [vmem:[%s1 + $0xec] sm:$0xf]
        %v539 = vld [vmem:[%s1 + $0xf0] sm:$0xf]
        %v540 = vld [vmem:[%s1 + $0xf4] sm:$0xf]
        %v541 = vld [vmem:[%s1 + $0xf8] sm:$0xf]
        %v542 = vld [vmem:[%s1 + $0xfc] sm:$0xf]
        %v543 = vld [vmem:[%s1 + $0x100] sm:$0xf]
        %v544 = vld [vmem:[%s1 + $0x104] sm:$0xf]
        %v545 = vld [vmem:[%s1 + $0x108] sm:$0xf]
        %v546 = vld [vmem:[%s1 + $0x10c] sm:$0xf]
        %v547 = vld [vmem:[%s1 + $0x110] sm:$0xf]
        %v548 = vld [vmem:[%s1 + $0x114] sm:$0xf]
        %v549 = vld [vmem:[%s1 + $0x118] sm:$0xf]
        %v550 = vld [vmem:[%s1 + $0x11c] sm:$0xf]
        %v551 = vld [vmem:[%s1 + $0x120] sm:$0xf]
        %v552 = vld [vmem:[%s1 + $0x124] sm:$0xf]
        %v553 = vld [vmem:[%s1 + $0x128] sm:$0xf]
        %v554 = vld [vmem:[%s1 + $0x12c] sm:$0xf]
        %v555 = vld [vmem:[%s1 + $0x130] sm:$0xf]
        %v556 = vld [vmem:[%s1 + $0x134] sm:$0xf]
        %v557 = vld [vmem:[%s1 + $0x138] sm:$0xf]
        %v558 = vld [vmem:[%s1 + $0x13c] sm:$0xf]
        %v559 = vld [vmem:[%s1 + $0x140] sm:$0xf]
        %v560 = vld [vmem:[%s1 + $0x144] sm:$0xf]
        %v561 = vld [vmem:[%s1 + $0x148] sm:$0xf]
        %v562 = vld [vmem:[%s1 + $0x14c] sm:$0xf]
        %v563 = vld [vmem:[%s1 + $0x150] sm:$0xf]
        %v564 = vld [vmem:[%s1 + $0x154] sm:$0xf]
        %v565 = vld [vmem:[%s1 + $0x158] sm:$0xf]
        %v566 = vld [vmem:[%s1 + $0x15c] sm:$0xf]
        %v567 = vld [vmem:[%s1 + $0x160] sm:$0xf]
        %v568 = vld [vmem:[%s1 + $0x164] sm:$0xf]
        %v569 = vld [vmem:[%s1 + $0x168] sm:$0xf]
        %v570 = vld [vmem:[%s1 + $0x16c] sm:$0xf]
        %v571 = vld [vmem:[%s1 + $0x170] sm:$0xf]
        %v572 = vld [vmem:[%s1 + $0x174] sm:$0xf]
        %v573 = vld [vmem:[%s1 + $0x178] sm:$0xf]
        %v574 = vld [vmem:[%s1 + $0x17c] sm:$0xf]
        %v575 = vld [vmem:[%s1 + $0x180] sm:$0xf]
        %v576 = vld [vmem:[%s1 + $0x184] sm:$0xf]
        %v577 = vld [vmem:[%s1 + $0x188] sm:$0xf]
        %v578 = vld [vmem:[%s1 + $0x18c] sm:$0xf]
        %v579 = vld [vmem:[%s1 + $0x190] sm:$0xf]
        %v580 = vld [vmem:[%s1 + $0x194] sm:$0xf]
        %v581 = vld [vmem:[%s1 + $0x198] sm:$0xf]
        %v582 = vld [vmem:[%s1 + $0x19c] sm:$0xf]
        %v583 = vld [vmem:[%s1 + $0x1a0] sm:$0xf]
        %v584 = vld [vmem:[%s1 + $0x1a4] sm:$0xf]
        %v585 = vld [vmem:[%s1 + $0x1a8] sm:$0xf]
        %v586 = vld [vmem:[%s1 + $0x1ac] sm:$0xf]
        %v587 = vld [vmem:[%s1 + $0x1b0] sm:$0xf]
        %v588 = vld [vmem:[%s1 + $0x1b4] sm:$0xf]
        %v589 = vld [vmem:[%s1 + $0x1b8] sm:$0xf]
        %v590 = vld [vmem:[%s1 + $0x1bc] sm:$0xf]
        %v591 = vld [vmem:[%s1 + $0x1c0] sm:$0xf]
        %v592 = vld [vmem:[%s1 + $0x1c4] sm:$0xf]
        %v593 = vld [vmem:[%s1 + $0x1c8] sm:$0xf]
        %v594 = vld [vmem:[%s1 + $0x1cc] sm:$0xf]
        %v595 = vld [vmem:[%s1 + $0x1d0] sm:$0xf]
        %v596 = vld [vmem:[%s1 + $0x1d4] sm:$0xf]
        %v597 = vld [vmem:[%s1 + $0x1d8] sm:$0xf]
        %v598 = vld [vmem:[%s1 + $0x1dc] sm:$0xf]
        %v599 = vld [vmem:[%s1 + $0x1e0] sm:$0xf]
        %v600 = vld [vmem:[%s1 + $0x1e4] sm:$0xf]
        %v601 = vld [vmem:[%s1 + $0x1e8] sm:$0xf]
        %v602 = vld [vmem:[%s1 + $0x1ec] sm:$0xf]
        %v603 = vld [vmem:[%s1 + $0x1f0] sm:$0xf]
        %v604 = vld [vmem:[%s1 + $0x1f4] sm:$0xf]
        %v605 = vld [vmem:[%s1 + $0x1f8] sm:$0xf]
        %v606 = vld [vmem:[%s1 + $0x1fc] sm:$0xf]
        %v607 = vld [vmem:[%s1 + $0x200] sm:$0xf]
        %v608 = vld [vmem:[%s1 + $0x204] sm:$0xf]
        %v609 = vld [vmem:[%s1 + $0x208] sm:$0xf]
        %v610 = vld [vmem:[%s1 + $0x20c] sm:$0xf]
        %v611 = vld [vmem:[%s1 + $0x210] sm:$0xf]
        %v612 = vld [vmem:[%s1 + $0x214] sm:$0xf]
        %v613 = vld [vmem:[%s1 + $0x218] sm:$0xf]
        %v614 = vld [vmem:[%s1 + $0x21c] sm:$0xf]
        %v615 = vld [vmem:[%s1 + $0x220] sm:$0xf]
        %v616 = vld [vmem:[%s1 + $0x224] sm:$0xf]
        %v617 = vld [vmem:[%s1 + $0x228] sm:$0xf]
        %v618 = vld [vmem:[%s1 + $0x22c] sm:$0xf]
        %v619 = vld [vmem:[%s1 + $0x230] sm:$0xf]
        %v620 = vld [vmem:[%s1 + $0x234] sm:$0xf]
        %v621 = vld [vmem:[%s1 + $0x238] sm:$0xf]
        %v622 = vld [vmem:[%s1 + $0x23c] sm:$0xf]
        %v623 = vld [vmem:[%s2] sm:$0x1]
        %v625 = vlaneseq
        %v626 = vshrl.u32 %v625, 7
        %v627 = vsub.s32 0, %v626
        %v628 = vrot.slane %v623, %v627
        %v774 = vunpack.c.l.b16 %v479
        %v775 = vunpack.c.l.b16 %v480
        %v776 = vunpack.c.l.b16 %v481
        %v777 = vunpack.c.l.b16 %v482
        %v778 = vunpack.c.l.b16 %v483
        %v779 = vunpack.c.l.b16 %v484
        %v780 = vunpack.c.l.b16 %v485
        %v781 = vunpack.c.l.b16 %v486
        %v782 = vunpack.c.l.b16 %v487
        %v783 = vunpack.c.l.b16 %v488
        %v784 = vunpack.c.l.b16 %v489
        %v785 = vunpack.c.l.b16 %v490
        %v786 = vunpack.c.l.b16 %v491
        %v787 = vunpack.c.l.b16 %v492
        %v788 = vunpack.c.l.b16 %v493
        %v789 = vunpack.c.l.b16 %v494
        %v790 = vunpack.c.l.b16 %v495
        %v791 = vunpack.c.l.b16 %v496
        %v792 = vunpack.c.l.b16 %v497
        %v793 = vunpack.c.l.b16 %v498
        %v794 = vunpack.c.l.b16 %v499
        %v795 = vunpack.c.l.b16 %v500
        %v796 = vunpack.c.l.b16 %v501
        %v797 = vunpack.c.l.b16 %v502
        %v798 = vunpack.c.l.b16 %v503
        %v799 = vunpack.c.l.b16 %v504
        %v800 = vunpack.c.l.b16 %v505
        %v801 = vunpack.c.l.b16 %v506
        %v802 = vunpack.c.l.b16 %v507
        %v803 = vunpack.c.l.b16 %v508
        %v804 = vunpack.c.l.b16 %v509
        %v805 = vunpack.c.l.b16 %v510
        %v806 = vunpack.c.l.b16 %v511
        %v807 = vunpack.c.l.b16 %v512
        %v808 = vunpack.c.l.b16 %v513
        %v809 = vunpack.c.l.b16 %v514
        %v810 = vunpack.c.l.b16 %v515
        %v811 = vunpack.c.l.b16 %v516
        %v812 = vunpack.c.l.b16 %v517
        %v813 = vunpack.c.l.b16 %v518
        %v814 = vunpack.c.l.b16 %v519
        %v815 = vunpack.c.l.b16 %v520
        %v816 = vunpack.c.l.b16 %v521
        %v817 = vunpack.c.l.b16 %v522
        %v818 = vunpack.c.l.b16 %v523
        %v819 = vunpack.c.l.b16 %v524
        %v820 = vunpack.c.l.b16 %v525
        %v821 = vunpack.c.l.b16 %v526
        %v822 = vunpack.c.l.b16 %v527
        %v823 = vunpack.c.l.b16 %v528
        %v824 = vunpack.c.l.b16 %v529
        %v825 = vunpack.c.l.b16 %v530
        %v826 = vunpack.c.l.b16 %v531
        %v827 = vunpack.c.l.b16 %v532
        %v828 = vunpack.c.l.b16 %v533
        %v829 = vunpack.c.l.b16 %v534
        %v830 = vunpack.c.l.b16 %v535
        %v831 = vunpack.c.l.b16 %v536
        %v832 = vunpack.c.l.b16 %v537
        %v833 = vunpack.c.l.b16 %v538
        %v834 = vunpack.c.l.b16 %v539
        %v835 = vunpack.c.l.b16 %v540
        %v836 = vunpack.c.l.b16 %v541
        %v837 = vunpack.c.l.b16 %v542
        %v838 = vunpack.c.l.b16 %v543
        %v839 = vunpack.c.l.b16 %v544
        %v840 = vunpack.c.l.b16 %v545
        %v841 = vunpack.c.l.b16 %v546
        %v842 = vunpack.c.l.b16 %v547
        %v843 = vunpack.c.l.b16 %v548
        %v844 = vunpack.c.l.b16 %v549
        %v845 = vunpack.c.l.b16 %v550
        %v846 = vunpack.c.l.b16 %v551
        %v847 = vunpack.c.l.b16 %v552
        %v848 = vunpack.c.l.b16 %v553
        %v849 = vunpack.c.l.b16 %v554
        %v850 = vunpack.c.l.b16 %v555
        %v851 = vunpack.c.l.b16 %v556
        %v852 = vunpack.c.l.b16 %v557
        %v853 = vunpack.c.l.b16 %v558
        %v854 = vunpack.c.l.b16 %v559
        %v855 = vunpack.c.l.b16 %v560
        %v856 = vunpack.c.l.b16 %v561
        %v857 = vunpack.c.l.b16 %v562
        %v858 = vunpack.c.l.b16 %v563
        %v859 = vunpack.c.l.b16 %v564
        %v860 = vunpack.c.l.b16 %v565
        %v861 = vunpack.c.l.b16 %v566
        %v862 = vunpack.c.l.b16 %v567
        %v863 = vunpack.c.l.b16 %v568
        %v864 = vunpack.c.l.b16 %v569
        %v865 = vunpack.c.l.b16 %v570
        %v866 = vunpack.c.l.b16 %v571
        %v867 = vunpack.c.l.b16 %v572
        %v868 = vunpack.c.l.b16 %v573
        %v869 = vunpack.c.l.b16 %v574
        %v870 = vunpack.c.l.b16 %v575
        %v871 = vunpack.c.l.b16 %v576
        %v872 = vunpack.c.l.b16 %v577
        %v873 = vunpack.c.l.b16 %v578
        %v874 = vunpack.c.l.b16 %v579
        %v875 = vunpack.c.l.b16 %v580
        %v876 = vunpack.c.l.b16 %v581
        %v877 = vunpack.c.l.b16 %v582
        %v878 = vunpack.c.l.b16 %v583
        %v879 = vunpack.c.l.b16 %v584
        %v880 = vunpack.c.l.b16 %v585
        %v881 = vunpack.c.l.b16 %v586
        %v882 = vunpack.c.l.b16 %v587
        %v883 = vunpack.c.l.b16 %v588
        %v884 = vunpack.c.l.b16 %v589
        %v885 = vunpack.c.l.b16 %v590
        %v886 = vunpack.c.l.b16 %v591
        %v887 = vunpack.c.l.b16 %v592
        %v888 = vunpack.c.l.b16 %v593
        %v889 = vunpack.c.l.b16 %v594
        %v890 = vunpack.c.l.b16 %v595
        %v891 = vunpack.c.l.b16 %v596
        %v892 = vunpack.c.l.b16 %v597
        %v893 = vunpack.c.l.b16 %v598
        %v894 = vunpack.c.l.b16 %v599
        %v895 = vunpack.c.l.b16 %v600
        %v896 = vunpack.c.l.b16 %v601
        %v897 = vunpack.c.l.b16 %v602
        %v898 = vunpack.c.l.b16 %v603
        %v899 = vunpack.c.l.b16 %v604
        %v900 = vunpack.c.l.b16 %v605
        %v901 = vunpack.c.l.b16 %v606
        %v902 = vunpack.c.l.b16 %v607
        %v903 = vunpack.c.l.b16 %v608
        %v904 = vunpack.c.l.b16 %v609
        %v905 = vunpack.c.l.b16 %v610
        %v906 = vunpack.c.l.b16 %v611
        %v907 = vunpack.c.l.b16 %v612
        %v908 = vunpack.c.l.b16 %v613
        %v909 = vunpack.c.l.b16 %v614
        %v910 = vunpack.c.l.b16 %v615
        %v911 = vunpack.c.l.b16 %v616
        %v912 = vunpack.c.l.b16 %v617
        %v913 = vunpack.c.l.b16 %v618
        %v914 = vunpack.c.l.b16 %v619
        %v915 = vunpack.c.l.b16 %v620
        %v916 = vunpack.c.l.b16 %v621
        %v917 = vunpack.c.l.b16 %v622
        %v918 = vpack.c.b16 %v775, %v774
        %v919 = vpack.c.b16 %v777, %v776
        %v920 = vpack.c.b16 %v779, %v778
        %v921 = vpack.c.b16 %v781, %v780
        %v922 = vpack.c.b16 %v783, %v782
        %v923 = vpack.c.b16 %v785, %v784
        %v924 = vpack.c.b16 %v787, %v786
        %v925 = vpack.c.b16 %v789, %v788
        %v926 = vpack.c.b16 %v791, %v790
        %v927 = vpack.c.b16 %v793, %v792
        %v928 = vpack.c.b16 %v795, %v794
        %v929 = vpack.c.b16 %v797, %v796
        %v930 = vpack.c.b16 %v799, %v798
        %v931 = vpack.c.b16 %v801, %v800
        %v932 = vpack.c.b16 %v803, %v802
        %v933 = vpack.c.b16 %v805, %v804
        %v934 = vpack.c.b16 %v807, %v806
        %v935 = vpack.c.b16 %v809, %v808
        %v936 = vpack.c.b16 %v811, %v810
        %v937 = vpack.c.b16 %v813, %v812
        %v938 = vpack.c.b16 %v815, %v814
        %v939 = vpack.c.b16 %v817, %v816
        %v940 = vpack.c.b16 %v819, %v818
        %v941 = vpack.c.b16 %v821, %v820
        %v942 = vpack.c.b16 %v823, %v822
        %v943 = vpack.c.b16 %v825, %v824
        %v944 = vpack.c.b16 %v827, %v826
        %v945 = vpack.c.b16 %v829, %v828
        %v946 = vpack.c.b16 %v831, %v830
        %v947 = vpack.c.b16 %v833, %v832
        %v948 = vpack.c.b16 %v835, %v834
        %v949 = vpack.c.b16 %v837, %v836
        %v950 = vpack.c.b16 %v839, %v838
        %v951 = vpack.c.b16 %v841, %v840
        %v952 = vpack.c.b16 %v843, %v842
        %v953 = vpack.c.b16 %v845, %v844
        %v954 = vpack.c.b16 %v847, %v846
        %v955 = vpack.c.b16 %v849, %v848
        %v956 = vpack.c.b16 %v851, %v850
        %v957 = vpack.c.b16 %v853, %v852
        %v958 = vpack.c.b16 %v855, %v854
        %v959 = vpack.c.b16 %v857, %v856
        %v960 = vpack.c.b16 %v859, %v858
        %v961 = vpack.c.b16 %v861, %v860
        %v962 = vpack.c.b16 %v863, %v862
        %v963 = vpack.c.b16 %v865, %v864
        %v964 = vpack.c.b16 %v867, %v866
        %v965 = vpack.c.b16 %v869, %v868
        %v966 = vpack.c.b16 %v871, %v870
        %v967 = vpack.c.b16 %v873, %v872
        %v968 = vpack.c.b16 %v875, %v874
        %v969 = vpack.c.b16 %v877, %v876
        %v970 = vpack.c.b16 %v879, %v878
        %v971 = vpack.c.b16 %v881, %v880
        %v972 = vpack.c.b16 %v883, %v882
        %v973 = vpack.c.b16 %v885, %v884
        %v974 = vpack.c.b16 %v887, %v886
        %v975 = vpack.c.b16 %v889, %v888
        %v976 = vpack.c.b16 %v891, %v890
        %v977 = vpack.c.b16 %v893, %v892
        %v978 = vpack.c.b16 %v895, %v894
        %v979 = vpack.c.b16 %v897, %v896
        %v980 = vpack.c.b16 %v899, %v898
        %v981 = vpack.c.b16 %v901, %v900
        %v982 = vpack.c.b16 %v903, %v902
        %v983 = vpack.c.b16 %v905, %v904
        %v984 = vpack.c.b16 %v907, %v906
        %v985 = vpack.c.b16 %v909, %v908
        %v986 = vpack.c.b16 %v911, %v910
        %v987 = vpack.c.b16 %v913, %v912
        %v988 = vpack.c.b16 %v915, %v914
        %v989 = vpack.c.b16 %v917, %v916
        %1062 = vmatprep.subr.bf16.mxu0 0
        %1063 = vmatpush1.bf16.msra.mxu0 %v918
        %1064 = vmatprep.subr.bf16.mxu0 0
        %1065 = vmatpush1.bf16.msra.mxu0 %v919
        %1066 = vmatprep.subr.bf16.mxu0 0
        %1067 = vmatpush1.bf16.msra.mxu0 %v920
        %1068 = vmatprep.subr.bf16.mxu0 0
        %1069 = vmatpush1.bf16.msra.mxu0 %v921
        %1070 = vmatprep.subr.bf16.mxu0 0
        %1071 = vmatpush1.bf16.msra.mxu0 %v922
        %1072 = vmatprep.subr.bf16.mxu0 0
        %1073 = vmatpush1.bf16.msra.mxu0 %v923
        %1074 = vmatprep.subr.bf16.mxu0 0
        %1075 = vmatpush1.bf16.msra.mxu0 %v924
        %1076 = vmatprep.subr.bf16.mxu0 0
        %1077 = vmatpush1.bf16.msra.mxu0 %v925
        %1078 = vmatprep.subr.bf16.mxu0 0
        %1079 = vmatpush1.bf16.msra.mxu0 %v926
        %1080 = vmatprep.subr.bf16.mxu0 0
        %1081 = vmatpush1.bf16.msra.mxu0 %v927
        %1082 = vmatprep.subr.bf16.mxu0 0
        %1083 = vmatpush1.bf16.msra.mxu0 %v928
        %1084 = vmatprep.subr.bf16.mxu0 0
        %1085 = vmatpush1.bf16.msra.mxu0 %v929
        %1086 = vmatprep.subr.bf16.mxu0 0
        %1087 = vmatpush1.bf16.msra.mxu0 %v930
        %1088 = vmatprep.subr.bf16.mxu0 0
        %1089 = vmatpush1.bf16.msra.mxu0 %v931
        %1090 = vmatprep.subr.bf16.mxu0 0
        %1091 = vmatpush1.bf16.msra.mxu0 %v932
        %1092 = vmatprep.subr.bf16.mxu0 0
        %1093 = vmatpush1.bf16.msra.mxu0 %v933
        %1094 = vmatprep.mubr.bf16.mxu0 %v465
        %1095 = vmatmul.mubr.bf16.gmra.mrb[0].mxu0 %v464
        %v1096 = vpop.f32.mrb[0].mxu0
        %v1097 = vadd.f32 %v628, %v1096
        %v1098 = vpop.f32.mrb[0].mxu0
        %v1099 = vpop.f32.mrb[0].mxu0
        %v1100 = vadd.f32 %v628, %v1099
        %v1101 = vpop.f32.mrb[0].mxu0
        %1102 = vmatprep.mubr.bf16.mxu0 %v471
        %1103 = vmatmul.mubr.bf16.gmra.mrb[0].mxu0 %v470
        %v1104 = vpop.f32.mrb[0].mxu0
        %v1105 = vadd.f32 %v628, %v1104
        %v1106 = vpop.f32.mrb[0].mxu0
        %v1107 = vpop.f32.mrb[0].mxu0
        %v1108 = vadd.f32 %v628, %v1107
        %v1109 = vpop.f32.mrb[0].mxu0
        %1110 = vdwg.mxu0
        %1111 = vmatprep.subr.bf16.mxu0 0
        %1112 = vmatpush1.bf16.msra.mxu0 %v934
        %1113 = vmatprep.subr.bf16.mxu0 0
        %1114 = vmatpush1.bf16.msra.mxu0 %v935
        %1115 = vmatprep.subr.bf16.mxu0 0
        %1116 = vmatpush1.bf16.msra.mxu0 %v936
        %1117 = vmatprep.subr.bf16.mxu0 0
        %1118 = vmatpush1.bf16.msra.mxu0 %v937
        %1119 = vmatprep.subr.bf16.mxu0 0
        %1120 = vmatpush1.bf16.msra.mxu0 %v938
        %1121 = vmatprep.subr.bf16.mxu0 0
        %1122 = vmatpush1.bf16.msra.mxu0 %v939
        %1123 = vmatprep.subr.bf16.mxu0 0
        %1124 = vmatpush1.bf16.msra.mxu0 %v940
        %1125 = vmatprep.subr.bf16.mxu0 0
        %1126 = vmatpush1.bf16.msra.mxu0 %v941
        %1127 = vmatprep.subr.bf16.mxu0 0
        %1128 = vmatpush1.bf16.msra.mxu0 %v942
        %1129 = vmatprep.subr.bf16.mxu0 0
        %1130 = vmatpush1.bf16.msra.mxu0 %v943
        %1131 = vmatprep.subr.bf16.mxu0 0
        %1132 = vmatpush1.bf16.msra.mxu0 %v944
        %1133 = vmatprep.subr.bf16.mxu0 0
        %1134 = vmatpush1.bf16.msra.mxu0 %v945
        %1135 = vmatprep.subr.bf16.mxu0 0
        %1136 = vmatpush1.bf16.msra.mxu0 %v946
        %1137 = vmatprep.subr.bf16.mxu0 0
        %1138 = vmatpush1.bf16.msra.mxu0 %v947
        %1139 = vmatprep.subr.bf16.mxu0 0
        %1140 = vmatpush1.bf16.msra.mxu0 %v948
        %1141 = vmatprep.subr.bf16.mxu0 0
        %1142 = vmatpush1.bf16.msra.mxu0 %v949
        %1143 = vmatprep.mubr.bf16.mxu0 %v467
        %1144 = vmatmul.mubr.bf16.gmra.mrb[0].mxu0 %v466
        %v1145 = vpop.f32.mrb[0].mxu0
        %v1146 = vadd.f32 %v1097, %v1145
        %v1147 = vpop.f32.mrb[0].mxu0
        %v1148 = vpop.f32.mrb[0].mxu0
        %v1149 = vadd.f32 %v1100, %v1148
        %v1150 = vpop.f32.mrb[0].mxu0
        %1151 = vmatprep.mubr.bf16.mxu0 %v473
        %1152 = vmatmul.mubr.bf16.gmra.mrb[0].mxu0 %v472
        %v1153 = vpop.f32.mrb[0].mxu0
        %v1154 = vadd.f32 %v1105, %v1153
        %v1155 = vpop.f32.mrb[0].mxu0
        %v1156 = vpop.f32.mrb[0].mxu0
        %v1157 = vadd.f32 %v1108, %v1156
        %v1158 = vpop.f32.mrb[0].mxu0
        %1159 = vdwg.mxu0
        %1160 = vmatprep.subr.bf16.mxu0 0
        %1161 = vmatpush1.bf16.msra.mxu0 %v950
        %1162 = vmatprep.subr.bf16.mxu0 0
        %1163 = vmatpush1.bf16.msra.mxu0 %v951
        %1164 = vmatprep.subr.bf16.mxu0 0
        %1165 = vmatpush1.bf16.msra.mxu0 %v952
        %1166 = vmatprep.subr.bf16.mxu0 0
        %1167 = vmatpush1.bf16.msra.mxu0 %v953
        %1168 = vmatprep.subr.bf16.mxu0 0
        %1169 = vmatpush1.bf16.msra.mxu0 %v954
        %1170 = vmatprep.subr.bf16.mxu0 0
        %1171 = vmatpush1.bf16.msra.mxu0 %v955
        %1172 = vmatprep.subr.bf16.mxu0 0
        %1173 = vmatpush1.bf16.msra.mxu0 %v956
        %1174 = vmatprep.subr.bf16.mxu0 0
        %1175 = vmatpush1.bf16.msra.mxu0 %v957
        %1176 = vmatprep.subr.bf16.mxu0 0
        %1177 = vmatpush1.bf16.msra.mxu0 %v958
        %1178 = vmatprep.subr.bf16.mxu0 0
        %1179 = vmatpush1.bf16.msra.mxu0 %v959
        %1180 = vmatprep.subr.bf16.mxu0 0
        %1181 = vmatpush1.bf16.msra.mxu0 %v960
        %1182 = vmatprep.subr.bf16.mxu0 0
        %1183 = vmatpush1.bf16.msra.mxu0 %v961
        %1184 = vmatprep.subr.bf16.mxu0 0
        %1185 = vmatpush1.bf16.msra.mxu0 %v962
        %1186 = vmatprep.subr.bf16.mxu0 0
        %1187 = vmatpush1.bf16.msra.mxu0 %v963
        %1188 = vmatprep.subr.bf16.mxu0 0
        %1189 = vmatpush1.bf16.msra.mxu0 %v964
        %1190 = vmatprep.subr.bf16.mxu0 0
        %1191 = vmatpush1.bf16.msra.mxu0 %v965
        %1192 = vmatprep.mubr.bf16.mxu0 %v469
        %1193 = vmatmul.mubr.bf16.gmra.mrb[0].mxu0 %v468
        %v1194 = vpop.f32.mrb[0].mxu0
        %v1195 = vadd.f32 %v1146, %v1194
        %v1196 = vpop.f32.mrb[0].mxu0
        %v1197 = vpop.f32.mrb[0].mxu0
        %v1198 = vadd.f32 %v1149, %v1197
        %v1199 = vpop.f32.mrb[0].mxu0
        %1200 = vmatprep.mubr.bf16.mxu0 %v475
        %1201 = vmatmul.mubr.bf16.gmra.mrb[0].mxu0 %v474
        %v1202 = vpop.f32.mrb[0].mxu0
        %v1203 = vadd.f32 %v1154, %v1202
        %v1204 = vpop.f32.mrb[0].mxu0
        %v1205 = vpop.f32.mrb[0].mxu0
        %v1206 = vadd.f32 %v1157, %v1205
        %v1207 = vpop.f32.mrb[0].mxu0
        %1208 = vdwg.mxu0
        %1209 = vmatprep.subr.bf16.mxu0 0
        %1210 = vmatpush1.bf16.msra.mxu0 %v966
        %1211 = vmatprep.subr.bf16.mxu0 0
        %1212 = vmatpush1.bf16.msra.mxu0 %v967
        %1213 = vmatprep.subr.bf16.mxu0 0
        %1214 = vmatpush1.bf16.msra.mxu0 %v968
        %1215 = vmatprep.subr.bf16.mxu0 0
        %1216 = vmatpush1.bf16.msra.mxu0 %v969
        %1217 = vmatprep.subr.bf16.mxu0 0
        %1218 = vmatpush1.bf16.msra.mxu0 %v970
        %1219 = vmatprep.subr.bf16.mxu0 0
        %1220 = vmatpush1.bf16.msra.mxu0 %v971
        %1221 = vmatprep.subr.bf16.mxu0 0
        %1222 = vmatpush1.bf16.msra.mxu0 %v972
        %1223 = vmatprep.subr.bf16.mxu0 0
        %1224 = vmatpush1.bf16.msra.mxu0 %v973
        %1225 = vmatprep.subr.bf16.mxu0 0
        %1226 = vmatpush1.bf16.msra.mxu0 %v974
        %1227 = vmatprep.subr.bf16.mxu0 0
        %1228 = vmatpush1.bf16.msra.mxu0 %v975
        %1229 = vmatprep.subr.bf16.mxu0 0
        %1230 = vmatpush1.bf16.msra.mxu0 %v976
        %1231 = vmatprep.subr.bf16.mxu0 0
        %1232 = vmatpush1.bf16.msra.mxu0 %v977
        %1233 = vmatprep.subr.bf16.mxu0 0
        %1234 = vmatpush1.bf16.msra.mxu0 %v978
        %1235 = vmatprep.subr.bf16.mxu0 0
        %1236 = vmatpush1.bf16.msra.mxu0 %v979
        %1237 = vmatprep.subr.bf16.mxu0 0
        %1238 = vmatpush1.bf16.msra.mxu0 %v980
        %1239 = vmatprep.subr.bf16.mxu0 0
        %1240 = vmatpush1.bf16.msra.mxu0 %v981
        %1241 = vmatprep.mubr.bf16.mxu0 %v471
        %1242 = vmatmul.mubr.bf16.gmra.mrb[0].mxu0 %v470
        %v1243 = vpop.f32.mrb[0].mxu0
        %v1244 = vadd.f32 %v1195, %v1243
        %v1245 = vpop.f32.mrb[0].mxu0
        %v1246 = vpop.f32.mrb[0].mxu0
        %v1247 = vadd.f32 %v1198, %v1246
        %v1248 = vpop.f32.mrb[0].mxu0
        %1249 = vmatprep.mubr.bf16.mxu0 %v477
        %1250 = vmatmul.mubr.bf16.gmra.mrb[0].mxu0 %v476
        %v1251 = vpop.f32.mrb[0].mxu0
        %v1252 = vadd.f32 %v1203, %v1251
        %v1253 = vpop.f32.mrb[0].mxu0
        %v1254 = vpop.f32.mrb[0].mxu0
        %v1255 = vadd.f32 %v1206, %v1254
        %v1256 = vpop.f32.mrb[0].mxu0
        %1257 = vdwg.mxu0
        %1258 = vmatprep.subr.bf16.mxu0 0
        %1259 = vmatpush1.bf16.msra.mxu0 %v982
        %1260 = vmatprep.subr.bf16.mxu0 0
        %1261 = vmatpush1.bf16.msra.mxu0 %v983
        %1262 = vmatprep.subr.bf16.mxu0 0
        %1263 = vmatpush1.bf16.msra.mxu0 %v984
        %1264 = vmatprep.subr.bf16.mxu0 0
        %1265 = vmatpush1.bf16.msra.mxu0 %v985
        %1266 = vmatprep.subr.bf16.mxu0 0
        %1267 = vmatpush1.bf16.msra.mxu0 %v986
        %1268 = vmatprep.subr.bf16.mxu0 0
        %1269 = vmatpush1.bf16.msra.mxu0 %v987
        %1270 = vmatprep.subr.bf16.mxu0 0
        %1271 = vmatpush1.bf16.msra.mxu0 %v988
        %1272 = vmatprep.subr.bf16.mxu0 0
        %1273 = vmatpush1.bf16.msra.mxu0 %v989
        %1274 = vmatprep.subr.bf16.mxu0 0
        %1275 = vmatpush1.bf16.msra.mxu0 0
        %1276 = vmatprep.subr.bf16.mxu0 0
        %1277 = vmatpush1.bf16.msra.mxu0 0
        %1278 = vmatprep.subr.bf16.mxu0 0
        %1279 = vmatpush1.bf16.msra.mxu0 0
        %1280 = vmatprep.subr.bf16.mxu0 0
        %1281 = vmatpush1.bf16.msra.mxu0 0
        %1282 = vmatprep.subr.bf16.mxu0 0
        %1283 = vmatpush1.bf16.msra.mxu0 0
        %1284 = vmatprep.subr.bf16.mxu0 0
        %1285 = vmatpush1.bf16.msra.mxu0 0
        %1286 = vmatprep.subr.bf16.mxu0 0
        %1287 = vmatpush1.bf16.msra.mxu0 0
        %1288 = vmatprep.subr.bf16.mxu0 0
        %1289 = vmatpush1.bf16.msra.mxu0 0
        %1290 = vmatprep.mubr.bf16.mxu0 0
        %1291 = vmatmul.mubr.bf16.gmra.mrb[0].mxu0 %v472
        %v1292 = vpop.f32.mrb[0].mxu0
        %v1293 = vadd.f32 %v1244, %v1292
        %v1294 = vpop.f32.mrb[0].mxu0
        %v1295 = vpop.f32.mrb[0].mxu0
        %v1296 = vadd.f32 %v1247, %v1295
        %v1297 = vpop.f32.mrb[0].mxu0
        %1298 = vmatprep.mubr.bf16.mxu0 0
        %1299 = vmatmul.mubr.bf16.gmra.mrb[0].mxu0 %v478
        %v1300 = vpop.f32.mrb[0].mxu0
        %v1301 = vadd.f32 %v1252, %v1300
        %v1302 = vpop.f32.mrb[0].mxu0
        %v1303 = vpop.f32.mrb[0].mxu0
        %v1304 = vadd.f32 %v1255, %v1303
        %v1305 = vpop.f32.mrb[0].mxu0
        %1306 = vdwg.mxu0
        %v1307 = vmax.f32 %v1293, 0.0
        %v1308 = vmax.f32 %v1296, 0.0
        %v1309 = vmax.f32 %v1301, 0.0
        %v1310 = vmax.f32 %v1304, 0.0
        %v1311 = vpack.c.bf16 %v1308, %v1307
        %v1312 = vpack.c.bf16 %v1310, %v1309
        %v1313 = vld [vmem:[%s3] sm:$0xf]
        %v1314 = vld [vmem:[%s3 + $0x4] sm:$0xf]
        %v1315 = vld [vmem:[%s3 + $0x8] sm:$0xf]
        %v1316 = vld [vmem:[%s3 + $0xc] sm:$0xf]
        %v1317 = vld [vmem:[%s4] sm:$0x1]
        %v1319 = vlaneseq
        %v1320 = vshrl.u32 %v1319, 7
        %v1321 = vsub.s32 0, %v1320
        %v1322 = vrot.slane %v1317, %v1321
        %v1328 = vunpack.c.l.b16 %v1313
        %v1329 = vunpack.c.l.b16 %v1314
        %v1330 = vunpack.c.l.b16 %v1315
        %v1331 = vunpack.c.l.b16 %v1316
        %v1332 = vpack.c.b16 %v1329, %v1328
        %v1333 = vpack.c.b16 %v1331, %v1330
        %vm1336 = vcmask 261120
        %v1338 = vsel %vm1336, %v1311, 0
        %v1341 = vsel %vm1336, %v1312, 0
        %1343 = vmatprep.subr.bf16.mxu0 0
        %1344 = vmatpush1.bf16.msra.mxu0 %v1332
        %1345 = vmatprep.subr.bf16.mxu0 0
        %1346 = vmatpush1.bf16.msra.mxu0 %v1333
        %1347 = vmatprep.subr.bf16.mxu0 0
        %1348 = vmatpush1.bf16.msra.mxu0 0
        %1349 = vmatprep.subr.bf16.mxu0 0
        %1350 = vmatpush1.bf16.msra.mxu0 0
        %1351 = vmatprep.subr.bf16.mxu0 0
        %1352 = vmatpush1.bf16.msra.mxu0 0
        %1353 = vmatprep.subr.bf16.mxu0 0
        %1354 = vmatpush1.bf16.msra.mxu0 0
        %1355 = vmatprep.subr.bf16.mxu0 0
        %1356 = vmatpush1.bf16.msra.mxu0 0
        %1357 = vmatprep.subr.bf16.mxu0 0
        %1358 = vmatpush1.bf16.msra.mxu0 0
        %1359 = vmatprep.subr.bf16.mxu0 0
        %1360 = vmatpush1.bf16.msra.mxu0 0
        %1361 = vmatprep.subr.bf16.mxu0 0
        %1362 = vmatpush1.bf16.msra.mxu0 0
        %1363 = vmatprep.subr.bf16.mxu0 0
        %1364 = vmatpush1.bf16.msra.mxu0 0
        %1365 = vmatprep.subr.bf16.mxu0 0
        %1366 = vmatpush1.bf16.msra.mxu0 0
        %1367 = vmatprep.subr.bf16.mxu0 0
        %1368 = vmatpush1.bf16.msra.mxu0 0
        %1369 = vmatprep.subr.bf16.mxu0 0
        %1370 = vmatpush1.bf16.msra.mxu0 0
        %1371 = vmatprep.subr.bf16.mxu0 0
        %1372 = vmatpush1.bf16.msra.mxu0 0
        %1373 = vmatprep.subr.bf16.mxu0 0
        %1374 = vmatpush1.bf16.msra.mxu0 0
        %1375 = vmatprep.mubr.bf16.mxu0 0
        %1376 = vmatmul.mubr.bf16.gmra.mrb[0].mxu0 %v1338
        %v1377 = vpop.f32.mrb[0].mxu0
        %v1378 = vadd.f32 %v1322, %v1377
        %v1379 = vpop.f32.mrb[0].mxu0
        %v1380 = vpop.f32.mrb[0].mxu0
        %v1381 = vadd.f32 %v1322, %v1380
        %v1382 = vpop.f32.mrb[0].mxu0
        %1383 = vmatprep.mubr.bf16.mxu0 0
        %1384 = vmatmul.mubr.bf16.gmra.mrb[0].mxu0 %v1341
        %v1385 = vpop.f32.mrb[0].mxu0
        %v1386 = vadd.f32 %v1322, %v1385
        %v1387 = vpop.f32.mrb[0].mxu0
        %v1388 = vpop.f32.mrb[0].mxu0
        %v1389 = vadd.f32 %v1322, %v1388
        %v1390 = vpop.f32.mrb[0].mxu0
        %1391 = vdwg.mxu0
        %1392 = vst [vmem:[%s241] sm:$0xff] %v1378
        %1393 = vst [vmem:[%s241 + $0x8] sm:$0xff] %v1381
        %1394 = vst [vmem:[%s241 + $0x10] sm:$0xff] %v1386
        %1395 = vst [vmem:[%s241 + $0x18] sm:$0xff] %v1389
        %s1396 = sand.u32 %s153, 1
        %s1397 = scalar_lea.sflag [#allocation3], %s1396
        %s1398 = sand.u32 %s153, 1
        %s1399 = smul.addr %s1398, 32
        %s1400 = scalar_lea.vmem [#allocation2], %s1399
        // Predicated region
        $region41: #{tpu_custom_call.1} parent=39 // pred_check
          %p1401 = pneg %p163
        $region42: #{tpu_custom_call.1} parent=39 // pred_check_branch
          %1403 = sbr.rel (%p1401) target = $region44
        $region43: #{tpu_custom_call.1} parent=39 // pred_region
          %s1405 = ssub.s32 512, 512
          %1406 = vsyncadd %s1397, %s1405
          %s1407 = smul.addr %s24, 4
          %s1408 = smul.addr %s23, 8
          %s1409 = sadd.s32 %s1407, %s1408
          %s1410 = smul.addr %s1409, 128
          %s1411 = scalar_lea.hbm %s5, %s1410
          %s1412 = sshll.u32 %s1400, 4
          %s1413 = int_to_ptr.vmem [resolvable:$true] %s1412
          %1418 = dma.vmem_to_hbm [thread:$0]  %s1413, 512, %s1411, %s1397, 128, 128, 8
        $region44: #{tpu_custom_call.1} parent=39 // pred_fallthru
          _
      $region40: #{tpu_custom_call.1} parent=5 // pred_fallthru
        _
      %p1419 = scmp.le.s32.totalorder 2, %s14
      // Predicated region
      $region45: #{tpu_custom_call.1} parent=5 // pred_check
        %p1420 = pneg %p1419
      $region46: #{tpu_custom_call.1} parent=5 // pred_check_branch
        %1422 = sbr.rel (%p1420) target = $region48
      $region47: #{tpu_custom_call.1} parent=5 // pred_region
        %s1423 = ssub.s32 %s14, 2
        // Predicated region
        $region49: #{tpu_custom_call.1} parent=47 // pred_check
          %p1424 = pneg %p169
        $region50: #{tpu_custom_call.1} parent=47 // pred_check_branch
          %1426 = sbr.rel (%p1424) target = $region52
        $region51: #{tpu_custom_call.1} parent=47 // pred_region
          %s1427 = sand.u32 %s154, 1
          %s1428 = scalar_lea.sflag [#allocation3], %s1427
          %s1429 = sand.u32 %s154, 1
          %s1430 = smul.addr %s1429, 32
          %s1431 = scalar_lea.vmem [#allocation2], %s1430
          %1432 = dma.done %s1428, 512
        $region52: #{tpu_custom_call.1} parent=47 // pred_fallthru
          _
      $region48: #{tpu_custom_call.1} parent=5 // pred_fallthru
        _
    $region6: #{tpu_custom_call.1} parent=1 // loop_footer
      %s18 = sadd.s32 1, %s14
    $region7: #{tpu_custom_call.1} parent=1 // loop_footer_branch
      %13 = sbr.rel target = $region3
    $region8: #{tpu_custom_call.1} parent=1 // loop_exit
      _
    %1433 = vsyncpa [#allocation3], 1
    %s1434 = scalar_lea.sflag [#allocation3], 1
    %1435 = vsyncpa %s1434, 1

</llo_original>
